<compile_context>
chip_gen: v5e
topology: v5e:2x2
jax: 0.10.0
libtpu: 0.0.40
codegen_flags: <defaults>
</compile_context>

<pallas_src>
import jax
import jax.numpy as jnp
from jax.experimental import pallas as pl
from jax.experimental.pallas import tpu as pltpu


def linear_bias_kernel(x_ref, w_ref, b_ref, o_ref):
    """One N-block of y = x @ W + b.

    x_ref: (M, K)   activations (bf16), resident across all grid steps
    w_ref: (K, tn)  weight block in (in, out) layout (bf16)
    b_ref: (1, tn)  bias block (f32)
    o_ref: (M, tn)  output block (f32)
    """
    y = jnp.dot(x_ref[...], w_ref[...], preferred_element_type=jnp.float32)
    o_ref[...] = (y + b_ref[...]).astype(o_ref.dtype)


def linear_pallas(x2d, weight_kn, bias, *, tn=128):
    """y = x2d @ weight_kn + bias, tiled over the output-feature dim.

    x2d:       (M, K)  activations
    weight_kn: (K, N)  weight, already re-laid-out from PyTorch (N, K)
    bias:      (N,)
    """
    M, K = x2d.shape
    K2, N = weight_kn.shape
    assert K == K2 and bias.shape == (N,)
    assert N % tn == 0, (N, tn)

    out_dtype = x2d.dtype

    # bf16 inputs for the MXU; accumulation stays f32 inside the kernel.
    x_bf = x2d if x2d.dtype == jnp.bfloat16 else x2d.astype(jnp.bfloat16)
    w_bf = (weight_kn if weight_kn.dtype == jnp.bfloat16
            else weight_kn.astype(jnp.bfloat16))
    b2d = bias.reshape(1, N).astype(jnp.float32)

    bytes_accessed = (M * K * 2) + (K * N * 2) + (N * 4) + (M * N * 4)

    return pl.pallas_call(
        linear_bias_kernel,
        out_shape=jax.ShapeDtypeStruct((M, N), out_dtype),
        grid=(N // tn,),
        in_specs=[
            # Activations: constant block index -> stay resident in VMEM.
            pl.BlockSpec((M, K), lambda j: (0, 0)),
            # Weight: one (K, tn) column-block per grid step (double-buffered).
            pl.BlockSpec((K, tn), lambda j: (0, j)),
            # Bias: matching (1, tn) block.
            pl.BlockSpec((1, tn), lambda j: (0, j)),
        ],
        out_specs=pl.BlockSpec((M, tn), lambda j: (0, j)),
        compiler_params=pltpu.CompilerParams(
            dimension_semantics=("parallel",),
        ),
        cost_estimate=pl.CostEstimate(
            flops=2 * M * K * N,
            transcendentals=0,
            bytes_accessed=bytes_accessed,
        ),
    )(x_bf, w_bf, b2d)


def forward(x, weight_kn, bias):
    """Equivalent of M.forward.

    x:         (B, H, W, 1536)  channels-last, matches the PyTorch input
    weight_kn: (1536, 384)      weight pre-transposed to (in, out) layout
                                (done once at parameter-init time)
    bias:      (384,)
    """
    # dropout30 / dropout31 have p=0.0 -> exact identities.
    B, H, W, Cin = x.shape
    Nout = weight_kn.shape[1]

    x2d = x.reshape(B * H * W, Cin)
    y2d = linear_pallas(x2d, weight_kn, bias)
    return y2d.reshape(B, H, W, Nout)


if __name__ == "__main__":
    key = jax.random.PRNGKey(0)
    kx, kw, kb = jax.random.split(key, 3)

    IN_FEATURES = 1536
    OUT_FEATURES = 384

    # Input shape implied by the module: [1, 14, 14, 1536]
    x = jax.random.normal(kx, (1, 14, 14, IN_FEATURES), dtype=jnp.float32)

    # Deterministic parameter init in PyTorch Linear layout (out, in) ...
    bound = 1.0 / jnp.sqrt(IN_FEATURES)
    weight_out_in = jax.random.uniform(
        kw, (OUT_FEATURES, IN_FEATURES), minval=-bound, maxval=bound,
        dtype=jnp.float32,
    )
    bias = jax.random.uniform(
        kb, (OUT_FEATURES,), minval=-bound, maxval=bound, dtype=jnp.float32,
    )
    # ... then re-laid-out ONCE to (K, N) bf16 for the MXU (amortized to zero).
    weight_kn = jnp.asarray(weight_out_in.T).astype(jnp.bfloat16)

    y = forward(x, weight_kn, bias)
    y = jax.block_until_ready(y)

    # Sanity check against plain-JAX f32 reference (bf16 inputs -> looser tol).
    y_ref = x.reshape(-1, IN_FEATURES) @ weight_out_in.T + bias
    y_ref = y_ref.reshape(1, 14, 14, OUT_FEATURES)
    assert y.shape == (1, 14, 14, OUT_FEATURES), y.shape
    assert jnp.allclose(y, y_ref, atol=2e-2, rtol=2e-2)

    print("KERNEL_OK")
</pallas_src>

<mosaic_0001>
module attributes {stable_mosaic.version = 11 : i64} {
  func.func @linear_bias_kernel(%arg0: i32, %arg1: memref<196x1536xbf16, #tpu.memory_space<vmem>>, %arg2: memref<1536x128xbf16, #tpu.memory_space<vmem>>, %arg3: memref<1x128xf32, #tpu.memory_space<vmem>>, %arg4: memref<196x128xf32, #tpu.memory_space<vmem>>) attributes {dimension_semantics = [#tpu.dimension_semantics<parallel>], iteration_bounds = array<i64: 3>, scalar_prefetch = 0 : i64, scratch_operands = 0 : i64, tpu.core_type = #tpu.core_type<tc>, window_params = [{pipeline_mode = #tpu.pipeline_mode<synchronous>, transform_indices = @transform_0, window_bounds = array<i64: 196, 1536>}, {transform_indices = @transform_1, window_bounds = array<i64: 1536, 128>}, {transform_indices = @transform_2, window_bounds = array<i64: 1, 128>}, {transform_indices = @transform_3, window_bounds = array<i64: 196, 128>}]} {
    %c0 = arith.constant 0 : index
    %c0_0 = arith.constant 0 : index
    %0 = vector.load %arg1[%c0, %c0_0] : memref<196x1536xbf16, #tpu.memory_space<vmem>>, vector<196x1536xbf16>
    %c0_1 = arith.constant 0 : index
    %c0_2 = arith.constant 0 : index
    %1 = vector.load %arg2[%c0_1, %c0_2] : memref<1536x128xbf16, #tpu.memory_space<vmem>>, vector<1536x128xbf16>
    %cst = arith.constant dense<0.000000e+00> : vector<196x128xf32>
    %2 = tpu.matmul %0, %1, %cst {dimension_numbers = #tpu.dot_dimension_numbers<[1], [0], [0], [1], [0, 0, 1, 1], [], []>} : vector<196x1536xbf16>, vector<1536x128xbf16>, vector<196x128xf32> -> vector<196x128xf32>
    %c0_3 = arith.constant 0 : index
    %c0_4 = arith.constant 0 : index
    %3 = vector.load %arg3[%c0_3, %c0_4] : memref<1x128xf32, #tpu.memory_space<vmem>>, vector<1x128xf32>
    %4 = vector.broadcast %3 : vector<1x128xf32> to vector<196x128xf32>
    %5 = arith.addf %2, %4 : vector<196x128xf32>
    %c0_5 = arith.constant 0 : index
    %c0_6 = arith.constant 0 : index
    %6 = vector.load %arg4[%c0_5, %c0_6] : memref<196x128xf32, #tpu.memory_space<vmem>>, vector<196x128xf32>
    tpu.vector_store %arg4[%c0_5, %c0_6], %5 {strides = array<i32>} : memref<196x128xf32, #tpu.memory_space<vmem>>, vector<196x128xf32>,
    return
  }
  func.func @transform_0(%arg0: i32) -> (i32, i32) {
    %c0_i32 = arith.constant 0 : i32
    %c0_i32_0 = arith.constant 0 : i32
    %c0_i32_1 = arith.constant 0 : i32
    return %c0_i32, %c0_i32_0 : i32, i32
  }
  func.func @transform_1(%arg0: i32) -> (i32, i32) {
    %c0_i32 = arith.constant 0 : i32
    %c0_i32_0 = arith.constant 0 : i32
    return %c0_i32, %arg0 : i32, i32
  }
  func.func @transform_2(%arg0: i32) -> (i32, i32) {
    %c0_i32 = arith.constant 0 : i32
    %c0_i32_0 = arith.constant 0 : i32
    return %c0_i32, %arg0 : i32, i32
  }
  func.func @transform_3(%arg0: i32) -> (i32, i32) {
    %c0_i32 = arith.constant 0 : i32
    %c0_i32_0 = arith.constant 0 : i32
    return %c0_i32, %arg0 : i32, i32
  }
}

</mosaic_0001>

<llo_original>
// kernel: tpu_custom_call.1
$region0: #{tpu_custom_call.1}
  #allocation0 [shape = 'u32[]', space=smem, size = 0x4, offset = 0x4, fixed_abs, tag = 'smem constant byte address 0x4 - core index']
  #allocation1 [shape = 'u32[72,128]{1,0:T(1,128)}', space=vmem, size = 0x9000, scoped, tag = 'internal scratch']
  %s0 = inlined_call_operand.hbm [shape: bf16[196,1536], index: 0, kind: input, shape index: {}]
  %s1 = inlined_call_operand.hbm [shape: bf16[1536,384], index: 1, kind: input, shape index: {}]
  %s2 = inlined_call_operand.hbm [shape: f32[1,384], index: 2, kind: input, shape index: {}]
  %s3 = inlined_call_operand.hbm [shape: f32[196,384], index: 3, kind: output, shape index: {}]
  %s4 = sld [smem:[#allocation0]]
  $region57: #{tpu_custom_call.1} parent=0
    _
  %s6 = ssub.s32 1, %s4
  %s7 = scalar_select 0, %s6, %s4
  $region1: #{tpu_custom_call.1} parent=0
    #allocation2 [shape = 'u8[614400]{0}', space=vmem, size = 0x96000, scoped, tag = 'input window, operand 0, single buffered']
    #allocation3 [shape = 's32[2]{0}', space=sflag, size = 0x8, scoped, tag = 'scoped memory for tpu_custom_call.1']
    #allocation4 [shape = 's32[2]{0}', space=sflag, size = 0x8, scoped, tag = 'scoped memory for tpu_custom_call.1']
    #allocation5 [shape = 'u8[786432]{0}', space=vmem, size = 0xc0000, scoped, tag = 'input window, operand 1']
    #allocation6 [shape = 's32[2]{0}', space=sflag, size = 0x8, scoped, tag = 'scoped memory for tpu_custom_call.1']
    #allocation7 [shape = 'u8[1024]{0}', space=vmem, size = 0x400, scoped, tag = 'input window, operand 2']
    #allocation8 [shape = 'u8[204800]{0}', space=vmem, size = 0x32000, scoped, tag = 'output window, operand 0']
    %8 = vsyncpa [#allocation3], 0
    %9 = vsyncpa [#allocation6], 0
    %s10 = scalar_lea.sflag [#allocation6], 1
    %11 = vsyncpa %s10, 0
    %12 = vsyncpa [#allocation4], 0
    %s13 = scalar_lea.sflag [#allocation4], 1
    %14 = vsyncpa %s13, 0
    loop: start=0, step=1, limit=5
    $region2: #{tpu_custom_call.1} parent=1 // loop_pre_header
      _
    $region3: #{tpu_custom_call.1} parent=1 // loop_header
      %s16 = sphi 0, %s20
      %p17 = scmp.ge.s32.totalorder %s16, 5
      %s24 = sphi 0, %s24
      %s26 = sphi 0, %s24
      %s27 = sphi 0, %s26
      %s41 = sphi 0, %s27
      %s47 = sphi 0, %s49
      %s50 = sphi 0, %s47
      %s51 = sphi 0, %s50
      %s67 = sphi 0, %s51
      %s73 = sphi 0, %s75
      %s76 = sphi 0, %s73
      %s77 = sphi 0, %s76
      %s93 = sphi 0, %s77
      %s99 = sphi 0, %s101
      %s102 = sphi 0, %s99
      %s103 = sphi 0, %s102
      %s119 = sphi 0, %s103
    $region4: #{tpu_custom_call.1} parent=1 // loop_header_branch
      %19 = sbr.rel (%p17) target = $region8
    $region5: #{tpu_custom_call.1} parent=1 // loop_body
      %s21 = ssub.s32 %s16, 1
      %s22 = ssub.s32 %s16, 2
      %s23 = sadd.s32 %s16, 1
      %s25 = sadd.s32 %s24, 1
      %p28 = scmp.eq.s32.totalorder %s16, 2
      %p29 = scmp.ne.s32.totalorder %s24, %s26
      %p30 = scmp.eq.s32.totalorder %s16, 0
      %p31 = por %p29, %p30
      %p32 = scmp.ne.s32.totalorder %s24, %s26
      %p33 = scmp.eq.s32.totalorder %s21, 2
      %p34 = por %p32, %p33
      %p35 = scmp.ne.s32.totalorder %s26, %s27
      %p36 = scmp.eq.s32.totalorder %s21, 0
      %p37 = por %p35, %p36
      %p38 = scmp.ne.s32.totalorder %s26, %s27
      %p39 = scmp.eq.s32.totalorder %s22, 2
      %p40 = por %p38, %p39
      %p42 = scmp.ne.s32.totalorder %s27, %s41
      %p43 = scmp.eq.s32.totalorder %s22, 0
      %p44 = por %p42, %p43
      %s45 = ssub.s32 %s16, %s23
      %p46 = scmp.eq.s32.totalorder %s45, 0
      %s48 = sadd.s32 %s47, 1
      %s49 = scalar_select %p46, %s47, %s48
      %p52 = pneg %p46
      %p53 = scmp.eq.s32.totalorder %s16, 2
      %p54 = por %p52, %p53
      %p55 = scmp.ne.s32.totalorder %s47, %s50
      %p56 = scmp.eq.s32.totalorder %s16, 0
      %p57 = por %p55, %p56
      %p58 = scmp.ne.s32.totalorder %s47, %s50
      %p59 = scmp.eq.s32.totalorder %s21, 2
      %p60 = por %p58, %p59
      %p61 = scmp.ne.s32.totalorder %s50, %s51
      %p62 = scmp.eq.s32.totalorder %s21, 0
      %p63 = por %p61, %p62
      %p64 = scmp.ne.s32.totalorder %s50, %s51
      %p65 = scmp.eq.s32.totalorder %s22, 2
      %p66 = por %p64, %p65
      %p68 = scmp.ne.s32.totalorder %s51, %s67
      %p69 = scmp.eq.s32.totalorder %s22, 0
      %p70 = por %p68, %p69
      %s71 = ssub.s32 %s16, %s23
      %p72 = scmp.eq.s32.totalorder %s71, 0
      %s74 = sadd.s32 %s73, 1
      %s75 = scalar_select %p72, %s73, %s74
      %p78 = pneg %p72
      %p79 = scmp.eq.s32.totalorder %s16, 2
      %p80 = por %p78, %p79
      %p81 = scmp.ne.s32.totalorder %s73, %s76
      %p82 = scmp.eq.s32.totalorder %s16, 0
      %p83 = por %p81, %p82
      %p84 = scmp.ne.s32.totalorder %s73, %s76
      %p85 = scmp.eq.s32.totalorder %s21, 2
      %p86 = por %p84, %p85
      %p87 = scmp.ne.s32.totalorder %s76, %s77
      %p88 = scmp.eq.s32.totalorder %s21, 0
      %p89 = por %p87, %p88
      %p90 = scmp.ne.s32.totalorder %s76, %s77
      %p91 = scmp.eq.s32.totalorder %s22, 2
      %p92 = por %p90, %p91
      %p94 = scmp.ne.s32.totalorder %s77, %s93
      %p95 = scmp.eq.s32.totalorder %s22, 0
      %p96 = por %p94, %p95
      %s97 = ssub.s32 %s16, %s23
      %p98 = scmp.eq.s32.totalorder %s97, 0
      %s100 = sadd.s32 %s99, 1
      %s101 = scalar_select %p98, %s99, %s100
      %p104 = pneg %p98
      %p105 = scmp.eq.s32.totalorder %s16, 2
      %p106 = por %p104, %p105
      %p107 = scmp.ne.s32.totalorder %s99, %s102
      %p108 = scmp.eq.s32.totalorder %s16, 0
      %p109 = por %p107, %p108
      %p110 = scmp.ne.s32.totalorder %s99, %s102
      %p111 = scmp.eq.s32.totalorder %s21, 2
      %p112 = por %p110, %p111
      %p113 = scmp.ne.s32.totalorder %s102, %s103
      %p114 = scmp.eq.s32.totalorder %s21, 0
      %p115 = por %p113, %p114
      %p116 = scmp.ne.s32.totalorder %s102, %s103
      %p117 = scmp.eq.s32.totalorder %s22, 2
      %p118 = por %p116, %p117
      %p120 = scmp.ne.s32.totalorder %s103, %s119
      %p121 = scmp.eq.s32.totalorder %s22, 0
      %p122 = por %p120, %p121
      %p123 = scmp.le.s32.totalorder 1, %s16
      %p124 = scmp.lt.s32.totalorder %s16, 4
      %p125 = pnand %p123, %p124
      %p126 = pneg %p125
      // Predicated region
      $region9: #{tpu_custom_call.1} parent=5 // pred_check
        _
      $region10: #{tpu_custom_call.1} parent=5 // pred_check_branch
        %128 = sbr.rel (%p125) target = $region12
      $region11: #{tpu_custom_call.1} parent=5 // pred_region
        %s129 = ssub.s32 %s16, 1
        // Predicated region
        $region13: #{tpu_custom_call.1} parent=11 // pred_check
          %p130 = pneg %p37
        $region14: #{tpu_custom_call.1} parent=11 // pred_check_branch
          %132 = sbr.rel (%p130) target = $region16
        $region15: #{tpu_custom_call.1} parent=11 // pred_region
          %134 = vsyncadd [#allocation3], 0
          %s135 = sshll.u32 %s0, 4
          %s136 = int_to_ptr.hbm [resolvable:$true] %s135
          %s137 = sshll.u32 [#allocation2], 4
          %s138 = int_to_ptr.vmem [resolvable:$true] %s137
          %143 = dma.hbm_to_vmem [thread:$0]  %s136, 19200, %s138, [#allocation3], 768, 768, 48
        $region16: #{tpu_custom_call.1} parent=11 // pred_fallthru
          _
      $region12: #{tpu_custom_call.1} parent=5 // pred_fallthru
        _
      %p144 = scmp.lt.s32.totalorder %s16, 3
      // Predicated region
      $region17: #{tpu_custom_call.1} parent=5 // pred_check
        %p145 = pneg %p144
      $region18: #{tpu_custom_call.1} parent=5 // pred_check_branch
        %147 = sbr.rel (%p145) target = $region20
      $region19: #{tpu_custom_call.1} parent=5 // pred_region
        // Predicated region
        $region21: #{tpu_custom_call.1} parent=19 // pred_check
          %p148 = pneg %p57
        $region22: #{tpu_custom_call.1} parent=19 // pred_check_branch
          %150 = sbr.rel (%p148) target = $region24
        $region23: #{tpu_custom_call.1} parent=19 // pred_region
          %s151 = sand.u32 %s16, 1
          %s152 = scalar_lea.sflag [#allocation6], %s151
          %s153 = sand.u32 %s47, 1
          %s154 = smul.addr %s153, 768
          %s155 = scalar_lea.vmem [#allocation5], %s154
          %157 = vsyncadd %s152, 0
          %s158 = smul.addr %s16, 4
          %s159 = scalar_lea.hbm %s1, %s158
          %s160 = sshll.u32 %s159, 4
          %s161 = int_to_ptr.hbm [resolvable:$true] %s160
          %s162 = sshll.u32 %s155, 4
          %s163 = int_to_ptr.vmem [resolvable:$true] %s162
          %168 = dma.hbm_to_vmem [thread:$0]  %s161, 12288, %s163, %s152, 192, 64, 4
        $region24: #{tpu_custom_call.1} parent=19 // pred_fallthru
          _
        // Predicated region
        $region25: #{tpu_custom_call.1} parent=19 // pred_check
          %p169 = pneg %p83
        $region26: #{tpu_custom_call.1} parent=19 // pred_check_branch
          %171 = sbr.rel (%p169) target = $region28
        $region27: #{tpu_custom_call.1} parent=19 // pred_region
          %s172 = sand.u32 %s16, 1
          %s173 = scalar_lea.sflag [#allocation6], %s172
          %s174 = sand.u32 %s73, 1
          %s175 = scalar_lea.vmem [#allocation7], %s174
          %177 = vsyncadd %s173, 0
          %s178 = scalar_lea.hbm %s2, %s16
          %s180 = sshll.u32 %s178, 4
          %s181 = int_to_ptr.hbm [resolvable:$true] %s180
          %s182 = sshll.u32 %s175, 4
          %s183 = int_to_ptr.vmem [resolvable:$true] %s182
          %185 = dma.hbm_to_vmem [thread:$0]  %s181, 16, %s183, %s173
        $region28: #{tpu_custom_call.1} parent=19 // pred_fallthru
          _
      $region20: #{tpu_custom_call.1} parent=5 // pred_fallthru
        _
      %p186 = scmp.le.s32.totalorder 1, %s16
      %p187 = scmp.lt.s32.totalorder %s16, 4
      %p188 = pnand %p186, %p187
      %p189 = pneg %p188
      // Predicated region
      $region29: #{tpu_custom_call.1} parent=5 // pred_check
        _
      $region30: #{tpu_custom_call.1} parent=5 // pred_check_branch
        %191 = sbr.rel (%p188) target = $region32
      $region31: #{tpu_custom_call.1} parent=5 // pred_region
        %s192 = ssub.s32 %s16, 1
        // Predicated region
        $region33: #{tpu_custom_call.1} parent=31 // pred_check
          %p193 = pneg %p37
        $region34: #{tpu_custom_call.1} parent=31 // pred_check_branch
          %195 = sbr.rel (%p193) target = $region36
        $region35: #{tpu_custom_call.1} parent=31 // pred_region
          %197 = dma.done [#allocation3], 19200
        $region36: #{tpu_custom_call.1} parent=31 // pred_fallthru
          _
        %s198 = sand.u32 %s21, 1
        %s199 = scalar_lea.sflag [#allocation6], %s198
        %s200 = sand.u32 %s50, 1
        %s201 = smul.addr %s200, 768
        %s202 = scalar_lea.vmem [#allocation5], %s201
        // Predicated region
        $region37: #{tpu_custom_call.1} parent=31 // pred_check
          %p203 = pneg %p63
        $region38: #{tpu_custom_call.1} parent=31 // pred_check_branch
          %205 = sbr.rel (%p203) target = $region40
        $region39: #{tpu_custom_call.1} parent=31 // pred_region
          %207 = dma.done %s199, 12288
        $region40: #{tpu_custom_call.1} parent=31 // pred_fallthru
          _
        %s208 = sand.u32 %s21, 1
        %s209 = scalar_lea.sflag [#allocation6], %s208
        %s210 = sand.u32 %s76, 1
        %s211 = scalar_lea.vmem [#allocation7], %s210
        // Predicated region
        $region41: #{tpu_custom_call.1} parent=31 // pred_check
          %p212 = pneg %p89
        $region42: #{tpu_custom_call.1} parent=31 // pred_check_branch
          %214 = sbr.rel (%p212) target = $region44
        $region43: #{tpu_custom_call.1} parent=31 // pred_region
          %216 = dma.done %s209, 16
        $region44: #{tpu_custom_call.1} parent=31 // pred_fallthru
          _
        %p217 = pneg %p37
        %p218 = pneg %p34
        %s219 = sand.u32 %s21, 1
        %s220 = scalar_lea.sflag [#allocation6], %s219
        %s221 = sand.u32 %s50, 1
        %s222 = smul.addr %s221, 768
        %s223 = scalar_lea.vmem [#allocation5], %s222
        %p224 = pneg %p63
        %p225 = pneg %p60
        %s226 = sand.u32 %s21, 1
        %s227 = scalar_lea.sflag [#allocation6], %s226
        %s228 = sand.u32 %s76, 1
        %s229 = scalar_lea.vmem [#allocation7], %s228
        %p230 = pneg %p89
        %p231 = pneg %p86
        %p232 = pneg %p115
        %p233 = pneg %p112
        %s234 = sand.u32 %s102, 1
        %s235 = scalar_lea.sflag [#allocation4], %s234
        %s236 = sand.u32 %s102, 1
        %s237 = smul.addr %s236, 200
        %s238 = scalar_lea.vmem [#allocation8], %s237
        %v239 = vld [vmem:[#allocation2] sm:$0xff]
        %v240 = vld [vmem:[#allocation2 + $0x8] sm:$0xff]
        %v241 = vld [vmem:[#allocation2 + $0x10] sm:$0xff]
        %v242 = vld [vmem:[#allocation2 + $0x18] sm:$0xff]
        %v243 = vld [vmem:[#allocation2 + $0x20] sm:$0xff]
        %v244 = vld [vmem:[#allocation2 + $0x28] sm:$0xff]
        %v245 = vld [vmem:[#allocation2 + $0x30] sm:$0xff]
        %v246 = vld [vmem:[#allocation2 + $0x38] sm:$0xff]
        %v247 = vld [vmem:[#allocation2 + $0x40] sm:$0xff]
        %v248 = vld [vmem:[#allocation2 + $0x48] sm:$0xff]
        %v249 = vld [vmem:[#allocation2 + $0x50] sm:$0xff]
        %v250 = vld [vmem:[#allocation2 + $0x58] sm:$0xff]
        %v251 = vld [vmem:[#allocation2 + $0x60] sm:$0xff]
        %v252 = vld [vmem:[#allocation2 + $0x68] sm:$0xff]
        %v253 = vld [vmem:[#allocation2 + $0x70] sm:$0xff]
        %v254 = vld [vmem:[#allocation2 + $0x78] sm:$0xff]
        %v255 = vld [vmem:[#allocation2 + $0x80] sm:$0xff]
        %v256 = vld [vmem:[#allocation2 + $0x88] sm:$0xff]
        %v257 = vld [vmem:[#allocation2 + $0x90] sm:$0xff]
        %v258 = vld [vmem:[#allocation2 + $0x98] sm:$0xff]
        %v259 = vld [vmem:[#allocation2 + $0xa0] sm:$0xff]
        %v260 = vld [vmem:[#allocation2 + $0xa8] sm:$0xff]
        %v261 = vld [vmem:[#allocation2 + $0xb0] sm:$0xff]
        %v262 = vld [vmem:[#allocation2 + $0xb8] sm:$0xff]
        %v263 = vld [vmem:[#allocation2 + $0xc0] sm:$0xff]
        %v264 = vld [vmem:[#allocation2 + $0xc8] sm:$0xff]
        %v265 = vld [vmem:[#allocation2 + $0xd0] sm:$0xff]
        %v266 = vld [vmem:[#allocation2 + $0xd8] sm:$0xff]
        %v267 = vld [vmem:[#allocation2 + $0xe0] sm:$0xff]
        %v268 = vld [vmem:[#allocation2 + $0xe8] sm:$0xff]
        %v269 = vld [vmem:[#allocation2 + $0xf0] sm:$0xff]
        %v270 = vld [vmem:[#allocation2 + $0xf8] sm:$0xff]
        %v271 = vld [vmem:[#allocation2 + $0x100] sm:$0xff]
        %v272 = vld [vmem:[#allocation2 + $0x108] sm:$0xff]
        %v273 = vld [vmem:[#allocation2 + $0x110] sm:$0xff]
        %v274 = vld [vmem:[#allocation2 + $0x118] sm:$0xff]
        %v275 = vld [vmem:[#allocation2 + $0x120] sm:$0xff]
        %v276 = vld [vmem:[#allocation2 + $0x128] sm:$0xff]
        %v277 = vld [vmem:[#allocation2 + $0x130] sm:$0xff]
        %v278 = vld [vmem:[#allocation2 + $0x138] sm:$0xff]
        %v279 = vld [vmem:[#allocation2 + $0x140] sm:$0xff]
        %v280 = vld [vmem:[#allocation2 + $0x148] sm:$0xff]
        %v281 = vld [vmem:[#allocation2 + $0x150] sm:$0xff]
        %v282 = vld [vmem:[#allocation2 + $0x158] sm:$0xff]
        %v283 = vld [vmem:[#allocation2 + $0x160] sm:$0xff]
        %v284 = vld [vmem:[#allocation2 + $0x168] sm:$0xff]
        %v285 = vld [vmem:[#allocation2 + $0x170] sm:$0xff]
        %v286 = vld [vmem:[#allocation2 + $0x178] sm:$0xff]
        %v287 = vld [vmem:[#allocation2 + $0x180] sm:$0xff]
        %v288 = vld [vmem:[#allocation2 + $0x188] sm:$0xff]
        %v289 = vld [vmem:[#allocation2 + $0x190] sm:$0xff]
        %v290 = vld [vmem:[#allocation2 + $0x198] sm:$0xff]
        %v291 = vld [vmem:[#allocation2 + $0x1a0] sm:$0xff]
        %v292 = vld [vmem:[#allocation2 + $0x1a8] sm:$0xff]
        %v293 = vld [vmem:[#allocation2 + $0x1b0] sm:$0xff]
        %v294 = vld [vmem:[#allocation2 + $0x1b8] sm:$0xff]
        %v295 = vld [vmem:[#allocation2 + $0x1c0] sm:$0xff]
        %v296 = vld [vmem:[#allocation2 + $0x1c8] sm:$0xff]
        %v297 = vld [vmem:[#allocation2 + $0x1d0] sm:$0xff]
        %v298 = vld [vmem:[#allocation2 + $0x1d8] sm:$0xff]
        %v299 = vld [vmem:[#allocation2 + $0x1e0] sm:$0xff]
        %v300 = vld [vmem:[#allocation2 + $0x1e8] sm:$0xff]
        %v301 = vld [vmem:[#allocation2 + $0x1f0] sm:$0xff]
        %v302 = vld [vmem:[#allocation2 + $0x1f8] sm:$0xff]
        %v303 = vld [vmem:[#allocation2 + $0x200] sm:$0xff]
        %v304 = vld [vmem:[#allocation2 + $0x208] sm:$0xff]
        %v305 = vld [vmem:[#allocation2 + $0x210] sm:$0xff]
        %v306 = vld [vmem:[#allocation2 + $0x218] sm:$0xff]
        %v307 = vld [vmem:[#allocation2 + $0x220] sm:$0xff]
        %v308 = vld [vmem:[#allocation2 + $0x228] sm:$0xff]
        %v309 = vld [vmem:[#allocation2 + $0x230] sm:$0xff]
        %v310 = vld [vmem:[#allocation2 + $0x238] sm:$0xff]
        %v311 = vld [vmem:[#allocation2 + $0x240] sm:$0xff]
        %v312 = vld [vmem:[#allocation2 + $0x248] sm:$0xff]
        %v313 = vld [vmem:[#allocation2 + $0x250] sm:$0xff]
        %v314 = vld [vmem:[#allocation2 + $0x258] sm:$0xff]
        %v315 = vld [vmem:[#allocation2 + $0x260] sm:$0xff]
        %v316 = vld [vmem:[#allocation2 + $0x268] sm:$0xff]
        %v317 = vld [vmem:[#allocation2 + $0x270] sm:$0xff]
        %v318 = vld [vmem:[#allocation2 + $0x278] sm:$0xff]
        %v319 = vld [vmem:[#allocation2 + $0x280] sm:$0xff]
        %v320 = vld [vmem:[#allocation2 + $0x288] sm:$0xff]
        %v321 = vld [vmem:[#allocation2 + $0x290] sm:$0xff]
        %v322 = vld [vmem:[#allocation2 + $0x298] sm:$0xff]
        %v323 = vld [vmem:[#allocation2 + $0x2a0] sm:$0xff]
        %v324 = vld [vmem:[#allocation2 + $0x2a8] sm:$0xff]
        %v325 = vld [vmem:[#allocation2 + $0x2b0] sm:$0xff]
        %v326 = vld [vmem:[#allocation2 + $0x2b8] sm:$0xff]
        %v327 = vld [vmem:[#allocation2 + $0x2c0] sm:$0xff]
        %v328 = vld [vmem:[#allocation2 + $0x2c8] sm:$0xff]
        %v329 = vld [vmem:[#allocation2 + $0x2d0] sm:$0xff]
        %v330 = vld [vmem:[#allocation2 + $0x2d8] sm:$0xff]
        %v331 = vld [vmem:[#allocation2 + $0x2e0] sm:$0xff]
        %v332 = vld [vmem:[#allocation2 + $0x2e8] sm:$0xff]
        %v333 = vld [vmem:[#allocation2 + $0x2f0] sm:$0xff]
        %v334 = vld [vmem:[#allocation2 + $0x2f8] sm:$0xff]
        %v335 = vld [vmem:[#allocation2 + $0x300] sm:$0xff]
        %v336 = vld [vmem:[#allocation2 + $0x308] sm:$0xff]
        %v337 = vld [vmem:[#allocation2 + $0x310] sm:$0xff]
        %v338 = vld [vmem:[#allocation2 + $0x318] sm:$0xff]
        %v339 = vld [vmem:[#allocation2 + $0x320] sm:$0xff]
        %v340 = vld [vmem:[#allocation2 + $0x328] sm:$0xff]
        %v341 = vld [vmem:[#allocation2 + $0x330] sm:$0xff]
        %v342 = vld [vmem:[#allocation2 + $0x338] sm:$0xff]
        %v343 = vld [vmem:[#allocation2 + $0x340] sm:$0xff]
        %v344 = vld [vmem:[#allocation2 + $0x348] sm:$0xff]
        %v345 = vld [vmem:[#allocation2 + $0x350] sm:$0xff]
        %v346 = vld [vmem:[#allocation2 + $0x358] sm:$0xff]
        %v347 = vld [vmem:[#allocation2 + $0x360] sm:$0xff]
        %v348 = vld [vmem:[#allocation2 + $0x368] sm:$0xff]
        %v349 = vld [vmem:[#allocation2 + $0x370] sm:$0xff]
        %v350 = vld [vmem:[#allocation2 + $0x378] sm:$0xff]
        %v351 = vld [vmem:[#allocation2 + $0x380] sm:$0xff]
        %v352 = vld [vmem:[#allocation2 + $0x388] sm:$0xff]
        %v353 = vld [vmem:[#allocation2 + $0x390] sm:$0xff]
        %v354 = vld [vmem:[#allocation2 + $0x398] sm:$0xff]
        %v355 = vld [vmem:[#allocation2 + $0x3a0] sm:$0xff]
        %v356 = vld [vmem:[#allocation2 + $0x3a8] sm:$0xff]
        %v357 = vld [vmem:[#allocation2 + $0x3b0] sm:$0xff]
        %v358 = vld [vmem:[#allocation2 + $0x3b8] sm:$0xff]
        %v359 = vld [vmem:[#allocation2 + $0x3c0] sm:$0xff]
        %v360 = vld [vmem:[#allocation2 + $0x3c8] sm:$0xff]
        %v361 = vld [vmem:[#allocation2 + $0x3d0] sm:$0xff]
        %v362 = vld [vmem:[#allocation2 + $0x3d8] sm:$0xff]
        %v363 = vld [vmem:[#allocation2 + $0x3e0] sm:$0xff]
        %v364 = vld [vmem:[#allocation2 + $0x3e8] sm:$0xff]
        %v365 = vld [vmem:[#allocation2 + $0x3f0] sm:$0xff]
        %v366 = vld [vmem:[#allocation2 + $0x3f8] sm:$0xff]
        %v367 = vld [vmem:[#allocation2 + $0x400] sm:$0xff]
        %v368 = vld [vmem:[#allocation2 + $0x408] sm:$0xff]
        %v369 = vld [vmem:[#allocation2 + $0x410] sm:$0xff]
        %v370 = vld [vmem:[#allocation2 + $0x418] sm:$0xff]
        %v371 = vld [vmem:[#allocation2 + $0x420] sm:$0xff]
        %v372 = vld [vmem:[#allocation2 + $0x428] sm:$0xff]
        %v373 = vld [vmem:[#allocation2 + $0x430] sm:$0xff]
        %v374 = vld [vmem:[#allocation2 + $0x438] sm:$0xff]
        %v375 = vld [vmem:[#allocation2 + $0x440] sm:$0xff]
        %v376 = vld [vmem:[#allocation2 + $0x448] sm:$0xff]
        %v377 = vld [vmem:[#allocation2 + $0x450] sm:$0xff]
        %v378 = vld [vmem:[#allocation2 + $0x458] sm:$0xff]
        %v379 = vld [vmem:[#allocation2 + $0x460] sm:$0xff]
        %v380 = vld [vmem:[#allocation2 + $0x468] sm:$0xff]
        %v381 = vld [vmem:[#allocation2 + $0x470] sm:$0xff]
        %v382 = vld [vmem:[#allocation2 + $0x478] sm:$0xff]
        %v383 = vld [vmem:[#allocation2 + $0x480] sm:$0x33]
        %v384 = vld [vmem:[#allocation2 + $0x488] sm:$0x33]
        %v385 = vld [vmem:[#allocation2 + $0x490] sm:$0x33]
        %v386 = vld [vmem:[#allocation2 + $0x498] sm:$0x33]
        %v387 = vld [vmem:[#allocation2 + $0x4a0] sm:$0x33]
        %v388 = vld [vmem:[#allocation2 + $0x4a8] sm:$0x33]
        %v389 = vld [vmem:[%s202] sm:$0xf]
        %v390 = vld [vmem:[%s202 + $0x4] sm:$0xf]
        %v391 = vld [vmem:[%s202 + $0x8] sm:$0xf]
        %v392 = vld [vmem:[%s202 + $0xc] sm:$0xf]
        %v393 = vld [vmem:[%s202 + $0x10] sm:$0xf]
        %v394 = vld [vmem:[%s202 + $0x14] sm:$0xf]
        %v395 = vld [vmem:[%s202 + $0x18] sm:$0xf]
        %v396 = vld [vmem:[%s202 + $0x1c] sm:$0xf]
        %v397 = vld [vmem:[%s202 + $0x20] sm:$0xf]
        %v398 = vld [vmem:[%s202 + $0x24] sm:$0xf]
        %v399 = vld [vmem:[%s202 + $0x28] sm:$0xf]
        %v400 = vld [vmem:[%s202 + $0x2c] sm:$0xf]
        %v401 = vld [vmem:[%s202 + $0x30] sm:$0xf]
        %v402 = vld [vmem:[%s202 + $0x34] sm:$0xf]
        %v403 = vld [vmem:[%s202 + $0x38] sm:$0xf]
        %v404 = vld [vmem:[%s202 + $0x3c] sm:$0xf]
        %v405 = vld [vmem:[%s202 + $0x40] sm:$0xf]
        %v406 = vld [vmem:[%s202 + $0x44] sm:$0xf]
        %v407 = vld [vmem:[%s202 + $0x48] sm:$0xf]
        %v408 = vld [vmem:[%s202 + $0x4c] sm:$0xf]
        %v409 = vld [vmem:[%s202 + $0x50] sm:$0xf]
        %v410 = vld [vmem:[%s202 + $0x54] sm:$0xf]
        %v411 = vld [vmem:[%s202 + $0x58] sm:$0xf]
        %v412 = vld [vmem:[%s202 + $0x5c] sm:$0xf]
        %v413 = vld [vmem:[%s202 + $0x60] sm:$0xf]
        %v414 = vld [vmem:[%s202 + $0x64] sm:$0xf]
        %v415 = vld [vmem:[%s202 + $0x68] sm:$0xf]
        %v416 = vld [vmem:[%s202 + $0x6c] sm:$0xf]
        %v417 = vld [vmem:[%s202 + $0x70] sm:$0xf]
        %v418 = vld [vmem:[%s202 + $0x74] sm:$0xf]
        %v419 = vld [vmem:[%s202 + $0x78] sm:$0xf]
        %v420 = vld [vmem:[%s202 + $0x7c] sm:$0xf]
        %v421 = vld [vmem:[%s202 + $0x80] sm:$0xf]
        %v422 = vld [vmem:[%s202 + $0x84] sm:$0xf]
        %v423 = vld [vmem:[%s202 + $0x88] sm:$0xf]
        %v424 = vld [vmem:[%s202 + $0x8c] sm:$0xf]
        %v425 = vld [vmem:[%s202 + $0x90] sm:$0xf]
        %v426 = vld [vmem:[%s202 + $0x94] sm:$0xf]
        %v427 = vld [vmem:[%s202 + $0x98] sm:$0xf]
        %v428 = vld [vmem:[%s202 + $0x9c] sm:$0xf]
        %v429 = vld [vmem:[%s202 + $0xa0] sm:$0xf]
        %v430 = vld [vmem:[%s202 + $0xa4] sm:$0xf]
        %v431 = vld [vmem:[%s202 + $0xa8] sm:$0xf]
        %v432 = vld [vmem:[%s202 + $0xac] sm:$0xf]
        %v433 = vld [vmem:[%s202 + $0xb0] sm:$0xf]
        %v434 = vld [vmem:[%s202 + $0xb4] sm:$0xf]
        %v435 = vld [vmem:[%s202 + $0xb8] sm:$0xf]
        %v436 = vld [vmem:[%s202 + $0xbc] sm:$0xf]
        %v437 = vld [vmem:[%s202 + $0xc0] sm:$0xf]
        %v438 = vld [vmem:[%s202 + $0xc4] sm:$0xf]
        %v439 = vld [vmem:[%s202 + $0xc8] sm:$0xf]
        %v440 = vld [vmem:[%s202 + $0xcc] sm:$0xf]
        %v441 = vld [vmem:[%s202 + $0xd0] sm:$0xf]
        %v442 = vld [vmem:[%s202 + $0xd4] sm:$0xf]
        %v443 = vld [vmem:[%s202 + $0xd8] sm:$0xf]
        %v444 = vld [vmem:[%s202 + $0xdc] sm:$0xf]
        %v445 = vld [vmem:[%s202 + $0xe0] sm:$0xf]
        %v446 = vld [vmem:[%s202 + $0xe4] sm:$0xf]
        %v447 = vld [vmem:[%s202 + $0xe8] sm:$0xf]
        %v448 = vld [vmem:[%s202 + $0xec] sm:$0xf]
        %v449 = vld [vmem:[%s202 + $0xf0] sm:$0xf]
        %v450 = vld [vmem:[%s202 + $0xf4] sm:$0xf]
        %v451 = vld [vmem:[%s202 + $0xf8] sm:$0xf]
        %v452 = vld [vmem:[%s202 + $0xfc] sm:$0xf]
        %v453 = vld [vmem:[%s202 + $0x100] sm:$0xf]
        %v454 = vld [vmem:[%s202 + $0x104] sm:$0xf]
        %v455 = vld [vmem:[%s202 + $0x108] sm:$0xf]
        %v456 = vld [vmem:[%s202 + $0x10c] sm:$0xf]
        %v457 = vld [vmem:[%s202 + $0x110] sm:$0xf]
        %v458 = vld [vmem:[%s202 + $0x114] sm:$0xf]
        %v459 = vld [vmem:[%s202 + $0x118] sm:$0xf]
        %v460 = vld [vmem:[%s202 + $0x11c] sm:$0xf]
        %v461 = vld [vmem:[%s202 + $0x120] sm:$0xf]
        %v462 = vld [vmem:[%s202 + $0x124] sm:$0xf]
        %v463 = vld [vmem:[%s202 + $0x128] sm:$0xf]
        %v464 = vld [vmem:[%s202 + $0x12c] sm:$0xf]
        %v465 = vld [vmem:[%s202 + $0x130] sm:$0xf]
        %v466 = vld [vmem:[%s202 + $0x134] sm:$0xf]
        %v467 = vld [vmem:[%s202 + $0x138] sm:$0xf]
        %v468 = vld [vmem:[%s202 + $0x13c] sm:$0xf]
        %v469 = vld [vmem:[%s202 + $0x140] sm:$0xf]
        %v470 = vld [vmem:[%s202 + $0x144] sm:$0xf]
        %v471 = vld [vmem:[%s202 + $0x148] sm:$0xf]
        %v472 = vld [vmem:[%s202 + $0x14c] sm:$0xf]
        %v473 = vld [vmem:[%s202 + $0x150] sm:$0xf]
        %v474 = vld [vmem:[%s202 + $0x154] sm:$0xf]
        %v475 = vld [vmem:[%s202 + $0x158] sm:$0xf]
        %v476 = vld [vmem:[%s202 + $0x15c] sm:$0xf]
        %v477 = vld [vmem:[%s202 + $0x160] sm:$0xf]
        %v478 = vld [vmem:[%s202 + $0x164] sm:$0xf]
        %v479 = vld [vmem:[%s202 + $0x168] sm:$0xf]
        %v480 = vld [vmem:[%s202 + $0x16c] sm:$0xf]
        %v481 = vld [vmem:[%s202 + $0x170] sm:$0xf]
        %v482 = vld [vmem:[%s202 + $0x174] sm:$0xf]
        %v483 = vld [vmem:[%s202 + $0x178] sm:$0xf]
        %v484 = vld [vmem:[%s202 + $0x17c] sm:$0xf]
        %v485 = vld [vmem:[%s202 + $0x180] sm:$0xf]
        %v486 = vld [vmem:[%s202 + $0x184] sm:$0xf]
        %v487 = vld [vmem:[%s202 + $0x188] sm:$0xf]
        %v488 = vld [vmem:[%s202 + $0x18c] sm:$0xf]
        %v489 = vld [vmem:[%s202 + $0x190] sm:$0xf]
        %v490 = vld [vmem:[%s202 + $0x194] sm:$0xf]
        %v491 = vld [vmem:[%s202 + $0x198] sm:$0xf]
        %v492 = vld [vmem:[%s202 + $0x19c] sm:$0xf]
        %v493 = vld [vmem:[%s202 + $0x1a0] sm:$0xf]
        %v494 = vld [vmem:[%s202 + $0x1a4] sm:$0xf]
        %v495 = vld [vmem:[%s202 + $0x1a8] sm:$0xf]
        %v496 = vld [vmem:[%s202 + $0x1ac] sm:$0xf]
        %v497 = vld [vmem:[%s202 + $0x1b0] sm:$0xf]
        %v498 = vld [vmem:[%s202 + $0x1b4] sm:$0xf]
        %v499 = vld [vmem:[%s202 + $0x1b8] sm:$0xf]
        %v500 = vld [vmem:[%s202 + $0x1bc] sm:$0xf]
        %v501 = vld [vmem:[%s202 + $0x1c0] sm:$0xf]
        %v502 = vld [vmem:[%s202 + $0x1c4] sm:$0xf]
        %v503 = vld [vmem:[%s202 + $0x1c8] sm:$0xf]
        %v504 = vld [vmem:[%s202 + $0x1cc] sm:$0xf]
        %v505 = vld [vmem:[%s202 + $0x1d0] sm:$0xf]
        %v506 = vld [vmem:[%s202 + $0x1d4] sm:$0xf]
        %v507 = vld [vmem:[%s202 + $0x1d8] sm:$0xf]
        %v508 = vld [vmem:[%s202 + $0x1dc] sm:$0xf]
        %v509 = vld [vmem:[%s202 + $0x1e0] sm:$0xf]
        %v510 = vld [vmem:[%s202 + $0x1e4] sm:$0xf]
        %v511 = vld [vmem:[%s202 + $0x1e8] sm:$0xf]
        %v512 = vld [vmem:[%s202 + $0x1ec] sm:$0xf]
        %v513 = vld [vmem:[%s202 + $0x1f0] sm:$0xf]
        %v514 = vld [vmem:[%s202 + $0x1f4] sm:$0xf]
        %v515 = vld [vmem:[%s202 + $0x1f8] sm:$0xf]
        %v516 = vld [vmem:[%s202 + $0x1fc] sm:$0xf]
        %v517 = vld [vmem:[%s202 + $0x200] sm:$0xf]
        %v518 = vld [vmem:[%s202 + $0x204] sm:$0xf]
        %v519 = vld [vmem:[%s202 + $0x208] sm:$0xf]
        %v520 = vld [vmem:[%s202 + $0x20c] sm:$0xf]
        %v521 = vld [vmem:[%s202 + $0x210] sm:$0xf]
        %v522 = vld [vmem:[%s202 + $0x214] sm:$0xf]
        %v523 = vld [vmem:[%s202 + $0x218] sm:$0xf]
        %v524 = vld [vmem:[%s202 + $0x21c] sm:$0xf]
        %v525 = vld [vmem:[%s202 + $0x220] sm:$0xf]
        %v526 = vld [vmem:[%s202 + $0x224] sm:$0xf]
        %v527 = vld [vmem:[%s202 + $0x228] sm:$0xf]
        %v528 = vld [vmem:[%s202 + $0x22c] sm:$0xf]
        %v529 = vld [vmem:[%s202 + $0x230] sm:$0xf]
        %v530 = vld [vmem:[%s202 + $0x234] sm:$0xf]
        %v531 = vld [vmem:[%s202 + $0x238] sm:$0xf]
        %v532 = vld [vmem:[%s202 + $0x23c] sm:$0xf]
        %v533 = vld [vmem:[%s202 + $0x240] sm:$0xf]
        %v534 = vld [vmem:[%s202 + $0x244] sm:$0xf]
        %v535 = vld [vmem:[%s202 + $0x248] sm:$0xf]
        %v536 = vld [vmem:[%s202 + $0x24c] sm:$0xf]
        %v537 = vld [vmem:[%s202 + $0x250] sm:$0xf]
        %v538 = vld [vmem:[%s202 + $0x254] sm:$0xf]
        %v539 = vld [vmem:[%s202 + $0x258] sm:$0xf]
        %v540 = vld [vmem:[%s202 + $0x25c] sm:$0xf]
        %v541 = vld [vmem:[%s202 + $0x260] sm:$0xf]
        %v542 = vld [vmem:[%s202 + $0x264] sm:$0xf]
        %v543 = vld [vmem:[%s202 + $0x268] sm:$0xf]
        %v544 = vld [vmem:[%s202 + $0x26c] sm:$0xf]
        %v545 = vld [vmem:[%s202 + $0x270] sm:$0xf]
        %v546 = vld [vmem:[%s202 + $0x274] sm:$0xf]
        %v547 = vld [vmem:[%s202 + $0x278] sm:$0xf]
        %v548 = vld [vmem:[%s202 + $0x27c] sm:$0xf]
        %v549 = vld [vmem:[%s202 + $0x280] sm:$0xf]
        %v550 = vld [vmem:[%s202 + $0x284] sm:$0xf]
        %v551 = vld [vmem:[%s202 + $0x288] sm:$0xf]
        %v552 = vld [vmem:[%s202 + $0x28c] sm:$0xf]
        %v553 = vld [vmem:[%s202 + $0x290] sm:$0xf]
        %v554 = vld [vmem:[%s202 + $0x294] sm:$0xf]
        %v555 = vld [vmem:[%s202 + $0x298] sm:$0xf]
        %v556 = vld [vmem:[%s202 + $0x29c] sm:$0xf]
        %v557 = vld [vmem:[%s202 + $0x2a0] sm:$0xf]
        %v558 = vld [vmem:[%s202 + $0x2a4] sm:$0xf]
        %v559 = vld [vmem:[%s202 + $0x2a8] sm:$0xf]
        %v560 = vld [vmem:[%s202 + $0x2ac] sm:$0xf]
        %v561 = vld [vmem:[%s202 + $0x2b0] sm:$0xf]
        %v562 = vld [vmem:[%s202 + $0x2b4] sm:$0xf]
        %v563 = vld [vmem:[%s202 + $0x2b8] sm:$0xf]
        %v564 = vld [vmem:[%s202 + $0x2bc] sm:$0xf]
        %v565 = vld [vmem:[%s202 + $0x2c0] sm:$0xf]
        %v566 = vld [vmem:[%s202 + $0x2c4] sm:$0xf]
        %v567 = vld [vmem:[%s202 + $0x2c8] sm:$0xf]
        %v568 = vld [vmem:[%s202 + $0x2cc] sm:$0xf]
        %v569 = vld [vmem:[%s202 + $0x2d0] sm:$0xf]
        %v570 = vld [vmem:[%s202 + $0x2d4] sm:$0xf]
        %v571 = vld [vmem:[%s202 + $0x2d8] sm:$0xf]
        %v572 = vld [vmem:[%s202 + $0x2dc] sm:$0xf]
        %v573 = vld [vmem:[%s202 + $0x2e0] sm:$0xf]
        %v574 = vld [vmem:[%s202 + $0x2e4] sm:$0xf]
        %v575 = vld [vmem:[%s202 + $0x2e8] sm:$0xf]
        %v576 = vld [vmem:[%s202 + $0x2ec] sm:$0xf]
        %v577 = vld [vmem:[%s202 + $0x2f0] sm:$0xf]
        %v578 = vld [vmem:[%s202 + $0x2f4] sm:$0xf]
        %v579 = vld [vmem:[%s202 + $0x2f8] sm:$0xf]
        %v580 = vld [vmem:[%s202 + $0x2fc] sm:$0xf]
        %v581 = vld [vmem:[%s211] sm:$0x1]
        %v583 = vperm.slane %v581, 0
        %v735 = vunpack.c.l.b16 %v239
        %v736 = vunpack.c.h.b16 %v239
        %v737 = vunpack.c.l.b16 %v240
        %v738 = vunpack.c.h.b16 %v240
        %v739 = vunpack.c.l.b16 %v241
        %v740 = vunpack.c.h.b16 %v241
        %v741 = vunpack.c.l.b16 %v242
        %v742 = vunpack.c.h.b16 %v242
        %v743 = vunpack.c.l.b16 %v243
        %v744 = vunpack.c.h.b16 %v243
        %v745 = vunpack.c.l.b16 %v244
        %v746 = vunpack.c.h.b16 %v244
        %v747 = vunpack.c.l.b16 %v245
        %v748 = vunpack.c.h.b16 %v245
        %v749 = vunpack.c.l.b16 %v246
        %v750 = vunpack.c.h.b16 %v246
        %v751 = vunpack.c.l.b16 %v247
        %v752 = vunpack.c.h.b16 %v247
        %v753 = vunpack.c.l.b16 %v248
        %v754 = vunpack.c.h.b16 %v248
        %v755 = vunpack.c.l.b16 %v249
        %v756 = vunpack.c.h.b16 %v249
        %v757 = vunpack.c.l.b16 %v250
        %v758 = vunpack.c.h.b16 %v250
        %v759 = vunpack.c.l.b16 %v251
        %v760 = vunpack.c.h.b16 %v251
        %v761 = vunpack.c.l.b16 %v252
        %v762 = vunpack.c.h.b16 %v252
        %v763 = vunpack.c.l.b16 %v253
        %v764 = vunpack.c.h.b16 %v253
        %v765 = vunpack.c.l.b16 %v254
        %v766 = vunpack.c.h.b16 %v254
        %v767 = vunpack.c.l.b16 %v255
        %v768 = vunpack.c.h.b16 %v255
        %v769 = vunpack.c.l.b16 %v256
        %v770 = vunpack.c.h.b16 %v256
        %v771 = vunpack.c.l.b16 %v257
        %v772 = vunpack.c.h.b16 %v257
        %v773 = vunpack.c.l.b16 %v258
        %v774 = vunpack.c.h.b16 %v258
        %v775 = vunpack.c.l.b16 %v259
        %v776 = vunpack.c.h.b16 %v259
        %v777 = vunpack.c.l.b16 %v260
        %v778 = vunpack.c.h.b16 %v260
        %v779 = vunpack.c.l.b16 %v261
        %v780 = vunpack.c.h.b16 %v261
        %v781 = vunpack.c.l.b16 %v262
        %v782 = vunpack.c.h.b16 %v262
        %v783 = vunpack.c.l.b16 %v263
        %v784 = vunpack.c.h.b16 %v263
        %v785 = vunpack.c.l.b16 %v264
        %v786 = vunpack.c.h.b16 %v264
        %v787 = vunpack.c.l.b16 %v265
        %v788 = vunpack.c.h.b16 %v265
        %v789 = vunpack.c.l.b16 %v266
        %v790 = vunpack.c.h.b16 %v266
        %v791 = vunpack.c.l.b16 %v267
        %v792 = vunpack.c.h.b16 %v267
        %v793 = vunpack.c.l.b16 %v268
        %v794 = vunpack.c.h.b16 %v268
        %v795 = vunpack.c.l.b16 %v269
        %v796 = vunpack.c.h.b16 %v269
        %v797 = vunpack.c.l.b16 %v270
        %v798 = vunpack.c.h.b16 %v270
        %v799 = vunpack.c.l.b16 %v271
        %v800 = vunpack.c.h.b16 %v271
        %v801 = vunpack.c.l.b16 %v272
        %v802 = vunpack.c.h.b16 %v272
        %v803 = vunpack.c.l.b16 %v273
        %v804 = vunpack.c.h.b16 %v273
        %v805 = vunpack.c.l.b16 %v274
        %v806 = vunpack.c.h.b16 %v274
        %v807 = vunpack.c.l.b16 %v275
        %v808 = vunpack.c.h.b16 %v275
        %v809 = vunpack.c.l.b16 %v276
        %v810 = vunpack.c.h.b16 %v276
        %v811 = vunpack.c.l.b16 %v277
        %v812 = vunpack.c.h.b16 %v277
        %v813 = vunpack.c.l.b16 %v278
        %v814 = vunpack.c.h.b16 %v278
        %v815 = vunpack.c.l.b16 %v279
        %v816 = vunpack.c.h.b16 %v279
        %v817 = vunpack.c.l.b16 %v280
        %v818 = vunpack.c.h.b16 %v280
        %v819 = vunpack.c.l.b16 %v281
        %v820 = vunpack.c.h.b16 %v281
        %v821 = vunpack.c.l.b16 %v282
        %v822 = vunpack.c.h.b16 %v282
        %v823 = vunpack.c.l.b16 %v283
        %v824 = vunpack.c.h.b16 %v283
        %v825 = vunpack.c.l.b16 %v284
        %v826 = vunpack.c.h.b16 %v284
        %v827 = vunpack.c.l.b16 %v285
        %v828 = vunpack.c.h.b16 %v285
        %v829 = vunpack.c.l.b16 %v286
        %v830 = vunpack.c.h.b16 %v286
        %v831 = vunpack.c.l.b16 %v287
        %v832 = vunpack.c.h.b16 %v287
        %v833 = vunpack.c.l.b16 %v288
        %v834 = vunpack.c.h.b16 %v288
        %v835 = vunpack.c.l.b16 %v289
        %v836 = vunpack.c.h.b16 %v289
        %v837 = vunpack.c.l.b16 %v290
        %v838 = vunpack.c.h.b16 %v290
        %v839 = vunpack.c.l.b16 %v291
        %v840 = vunpack.c.h.b16 %v291
        %v841 = vunpack.c.l.b16 %v292
        %v842 = vunpack.c.h.b16 %v292
        %v843 = vunpack.c.l.b16 %v293
        %v844 = vunpack.c.h.b16 %v293
        %v845 = vunpack.c.l.b16 %v294
        %v846 = vunpack.c.h.b16 %v294
        %v847 = vunpack.c.l.b16 %v295
        %v848 = vunpack.c.h.b16 %v295
        %v849 = vunpack.c.l.b16 %v296
        %v850 = vunpack.c.h.b16 %v296
        %v851 = vunpack.c.l.b16 %v297
        %v852 = vunpack.c.h.b16 %v297
        %v853 = vunpack.c.l.b16 %v298
        %v854 = vunpack.c.h.b16 %v298
        %v855 = vunpack.c.l.b16 %v299
        %v856 = vunpack.c.h.b16 %v299
        %v857 = vunpack.c.l.b16 %v300
        %v858 = vunpack.c.h.b16 %v300
        %v859 = vunpack.c.l.b16 %v301
        %v860 = vunpack.c.h.b16 %v301
        %v861 = vunpack.c.l.b16 %v302
        %v862 = vunpack.c.h.b16 %v302
        %v863 = vunpack.c.l.b16 %v303
        %v864 = vunpack.c.h.b16 %v303
        %v865 = vunpack.c.l.b16 %v304
        %v866 = vunpack.c.h.b16 %v304
        %v867 = vunpack.c.l.b16 %v305
        %v868 = vunpack.c.h.b16 %v305
        %v869 = vunpack.c.l.b16 %v306
        %v870 = vunpack.c.h.b16 %v306
        %v871 = vunpack.c.l.b16 %v307
        %v872 = vunpack.c.h.b16 %v307
        %v873 = vunpack.c.l.b16 %v308
        %v874 = vunpack.c.h.b16 %v308
        %v875 = vunpack.c.l.b16 %v309
        %v876 = vunpack.c.h.b16 %v309
        %v877 = vunpack.c.l.b16 %v310
        %v878 = vunpack.c.h.b16 %v310
        %v879 = vunpack.c.l.b16 %v311
        %v880 = vunpack.c.h.b16 %v311
        %v881 = vunpack.c.l.b16 %v312
        %v882 = vunpack.c.h.b16 %v312
        %v883 = vunpack.c.l.b16 %v313
        %v884 = vunpack.c.h.b16 %v313
        %v885 = vunpack.c.l.b16 %v314
        %v886 = vunpack.c.h.b16 %v314
        %v887 = vunpack.c.l.b16 %v315
        %v888 = vunpack.c.h.b16 %v315
        %v889 = vunpack.c.l.b16 %v316
        %v890 = vunpack.c.h.b16 %v316
        %v891 = vunpack.c.l.b16 %v317
        %v892 = vunpack.c.h.b16 %v317
        %v893 = vunpack.c.l.b16 %v318
        %v894 = vunpack.c.h.b16 %v318
        %v895 = vunpack.c.l.b16 %v319
        %v896 = vunpack.c.h.b16 %v319
        %v897 = vunpack.c.l.b16 %v320
        %v898 = vunpack.c.h.b16 %v320
        %v899 = vunpack.c.l.b16 %v321
        %v900 = vunpack.c.h.b16 %v321
        %v901 = vunpack.c.l.b16 %v322
        %v902 = vunpack.c.h.b16 %v322
        %v903 = vunpack.c.l.b16 %v323
        %v904 = vunpack.c.h.b16 %v323
        %v905 = vunpack.c.l.b16 %v324
        %v906 = vunpack.c.h.b16 %v324
        %v907 = vunpack.c.l.b16 %v325
        %v908 = vunpack.c.h.b16 %v325
        %v909 = vunpack.c.l.b16 %v326
        %v910 = vunpack.c.h.b16 %v326
        %v911 = vunpack.c.l.b16 %v327
        %v912 = vunpack.c.h.b16 %v327
        %v913 = vunpack.c.l.b16 %v328
        %v914 = vunpack.c.h.b16 %v328
        %v915 = vunpack.c.l.b16 %v329
        %v916 = vunpack.c.h.b16 %v329
        %v917 = vunpack.c.l.b16 %v330
        %v918 = vunpack.c.h.b16 %v330
        %v919 = vunpack.c.l.b16 %v331
        %v920 = vunpack.c.h.b16 %v331
        %v921 = vunpack.c.l.b16 %v332
        %v922 = vunpack.c.h.b16 %v332
        %v923 = vunpack.c.l.b16 %v333
        %v924 = vunpack.c.h.b16 %v333
        %v925 = vunpack.c.l.b16 %v334
        %v926 = vunpack.c.h.b16 %v334
        %v927 = vunpack.c.l.b16 %v335
        %v928 = vunpack.c.h.b16 %v335
        %v929 = vunpack.c.l.b16 %v336
        %v930 = vunpack.c.h.b16 %v336
        %v931 = vunpack.c.l.b16 %v337
        %v932 = vunpack.c.h.b16 %v337
        %v933 = vunpack.c.l.b16 %v338
        %v934 = vunpack.c.h.b16 %v338
        %v935 = vunpack.c.l.b16 %v339
        %v936 = vunpack.c.h.b16 %v339
        %v937 = vunpack.c.l.b16 %v340
        %v938 = vunpack.c.h.b16 %v340
        %v939 = vunpack.c.l.b16 %v341
        %v940 = vunpack.c.h.b16 %v341
        %v941 = vunpack.c.l.b16 %v342
        %v942 = vunpack.c.h.b16 %v342
        %v943 = vunpack.c.l.b16 %v343
        %v944 = vunpack.c.h.b16 %v343
        %v945 = vunpack.c.l.b16 %v344
        %v946 = vunpack.c.h.b16 %v344
        %v947 = vunpack.c.l.b16 %v345
        %v948 = vunpack.c.h.b16 %v345
        %v949 = vunpack.c.l.b16 %v346
        %v950 = vunpack.c.h.b16 %v346
        %v951 = vunpack.c.l.b16 %v347
        %v952 = vunpack.c.h.b16 %v347
        %v953 = vunpack.c.l.b16 %v348
        %v954 = vunpack.c.h.b16 %v348
        %v955 = vunpack.c.l.b16 %v349
        %v956 = vunpack.c.h.b16 %v349
        %v957 = vunpack.c.l.b16 %v350
        %v958 = vunpack.c.h.b16 %v350
        %v959 = vunpack.c.l.b16 %v351
        %v960 = vunpack.c.h.b16 %v351
        %v961 = vunpack.c.l.b16 %v352
        %v962 = vunpack.c.h.b16 %v352
        %v963 = vunpack.c.l.b16 %v353
        %v964 = vunpack.c.h.b16 %v353
        %v965 = vunpack.c.l.b16 %v354
        %v966 = vunpack.c.h.b16 %v354
        %v967 = vunpack.c.l.b16 %v355
        %v968 = vunpack.c.h.b16 %v355
        %v969 = vunpack.c.l.b16 %v356
        %v970 = vunpack.c.h.b16 %v356
        %v971 = vunpack.c.l.b16 %v357
        %v972 = vunpack.c.h.b16 %v357
        %v973 = vunpack.c.l.b16 %v358
        %v974 = vunpack.c.h.b16 %v358
        %v975 = vunpack.c.l.b16 %v359
        %v976 = vunpack.c.h.b16 %v359
        %v977 = vunpack.c.l.b16 %v360
        %v978 = vunpack.c.h.b16 %v360
        %v979 = vunpack.c.l.b16 %v361
        %v980 = vunpack.c.h.b16 %v361
        %v981 = vunpack.c.l.b16 %v362
        %v982 = vunpack.c.h.b16 %v362
        %v983 = vunpack.c.l.b16 %v363
        %v984 = vunpack.c.h.b16 %v363
        %v985 = vunpack.c.l.b16 %v364
        %v986 = vunpack.c.h.b16 %v364
        %v987 = vunpack.c.l.b16 %v365
        %v988 = vunpack.c.h.b16 %v365
        %v989 = vunpack.c.l.b16 %v366
        %v990 = vunpack.c.h.b16 %v366
        %v991 = vunpack.c.l.b16 %v367
        %v992 = vunpack.c.h.b16 %v367
        %v993 = vunpack.c.l.b16 %v368
        %v994 = vunpack.c.h.b16 %v368
        %v995 = vunpack.c.l.b16 %v369
        %v996 = vunpack.c.h.b16 %v369
        %v997 = vunpack.c.l.b16 %v370
        %v998 = vunpack.c.h.b16 %v370
        %v999 = vunpack.c.l.b16 %v371
        %v1000 = vunpack.c.h.b16 %v371
        %v1001 = vunpack.c.l.b16 %v372
        %v1002 = vunpack.c.h.b16 %v372
        %v1003 = vunpack.c.l.b16 %v373
        %v1004 = vunpack.c.h.b16 %v373
        %v1005 = vunpack.c.l.b16 %v374
        %v1006 = vunpack.c.h.b16 %v374
        %v1007 = vunpack.c.l.b16 %v375
        %v1008 = vunpack.c.h.b16 %v375
        %v1009 = vunpack.c.l.b16 %v376
        %v1010 = vunpack.c.h.b16 %v376
        %v1011 = vunpack.c.l.b16 %v377
        %v1012 = vunpack.c.h.b16 %v377
        %v1013 = vunpack.c.l.b16 %v378
        %v1014 = vunpack.c.h.b16 %v378
        %v1015 = vunpack.c.l.b16 %v379
        %v1016 = vunpack.c.h.b16 %v379
        %v1017 = vunpack.c.l.b16 %v380
        %v1018 = vunpack.c.h.b16 %v380
        %v1019 = vunpack.c.l.b16 %v381
        %v1020 = vunpack.c.h.b16 %v381
        %v1021 = vunpack.c.l.b16 %v382
        %v1022 = vunpack.c.h.b16 %v382
        %v1023 = vunpack.c.l.b16 %v383
        %v1024 = vunpack.c.h.b16 %v383
        %v1025 = vunpack.c.l.b16 %v384
        %v1026 = vunpack.c.h.b16 %v384
        %v1027 = vunpack.c.l.b16 %v385
        %v1028 = vunpack.c.h.b16 %v385
        %v1029 = vunpack.c.l.b16 %v386
        %v1030 = vunpack.c.h.b16 %v386
        %v1031 = vunpack.c.l.b16 %v387
        %v1032 = vunpack.c.h.b16 %v387
        %v1033 = vunpack.c.l.b16 %v388
        %v1034 = vunpack.c.h.b16 %v388
        %v1035 = vpack.c.b16 %v747, %v735
        %v1036 = vpack.c.b16 %v748, %v736
        %v1037 = vpack.c.b16 %v749, %v737
        %v1038 = vpack.c.b16 %v750, %v738
        %v1039 = vpack.c.b16 %v751, %v739
        %v1040 = vpack.c.b16 %v752, %v740
        %v1041 = vpack.c.b16 %v753, %v741
        %v1042 = vpack.c.b16 %v754, %v742
        %v1043 = vpack.c.b16 %v755, %v743
        %v1044 = vpack.c.b16 %v756, %v744
        %v1045 = vpack.c.b16 %v757, %v745
        %v1046 = vpack.c.b16 %v758, %v746
        %v1047 = vpack.c.b16 %v771, %v759
        %v1048 = vpack.c.b16 %v772, %v760
        %v1049 = vpack.c.b16 %v773, %v761
        %v1050 = vpack.c.b16 %v774, %v762
        %v1051 = vpack.c.b16 %v775, %v763
        %v1052 = vpack.c.b16 %v776, %v764
        %v1053 = vpack.c.b16 %v777, %v765
        %v1054 = vpack.c.b16 %v778, %v766
        %v1055 = vpack.c.b16 %v779, %v767
        %v1056 = vpack.c.b16 %v780, %v768
        %v1057 = vpack.c.b16 %v781, %v769
        %v1058 = vpack.c.b16 %v782, %v770
        %v1059 = vpack.c.b16 %v795, %v783
        %v1060 = vpack.c.b16 %v796, %v784
        %v1061 = vpack.c.b16 %v797, %v785
        %v1062 = vpack.c.b16 %v798, %v786
        %v1063 = vpack.c.b16 %v799, %v787
        %v1064 = vpack.c.b16 %v800, %v788
        %v1065 = vpack.c.b16 %v801, %v789
        %v1066 = vpack.c.b16 %v802, %v790
        %v1067 = vpack.c.b16 %v803, %v791
        %v1068 = vpack.c.b16 %v804, %v792
        %v1069 = vpack.c.b16 %v805, %v793
        %v1070 = vpack.c.b16 %v806, %v794
        %v1071 = vpack.c.b16 %v819, %v807
        %v1072 = vpack.c.b16 %v820, %v808
        %v1073 = vpack.c.b16 %v821, %v809
        %v1074 = vpack.c.b16 %v822, %v810
        %v1075 = vpack.c.b16 %v823, %v811
        %v1076 = vpack.c.b16 %v824, %v812
        %v1077 = vpack.c.b16 %v825, %v813
        %v1078 = vpack.c.b16 %v826, %v814
        %v1079 = vpack.c.b16 %v827, %v815
        %v1080 = vpack.c.b16 %v828, %v816
        %v1081 = vpack.c.b16 %v829, %v817
        %v1082 = vpack.c.b16 %v830, %v818
        %v1083 = vpack.c.b16 %v843, %v831
        %v1084 = vpack.c.b16 %v844, %v832
        %v1085 = vpack.c.b16 %v845, %v833
        %v1086 = vpack.c.b16 %v846, %v834
        %v1087 = vpack.c.b16 %v847, %v835
        %v1088 = vpack.c.b16 %v848, %v836
        %v1089 = vpack.c.b16 %v849, %v837
        %v1090 = vpack.c.b16 %v850, %v838
        %v1091 = vpack.c.b16 %v851, %v839
        %v1092 = vpack.c.b16 %v852, %v840
        %v1093 = vpack.c.b16 %v853, %v841
        %v1094 = vpack.c.b16 %v854, %v842
        %v1095 = vpack.c.b16 %v867, %v855
        %v1096 = vpack.c.b16 %v868, %v856
        %v1097 = vpack.c.b16 %v869, %v857
        %v1098 = vpack.c.b16 %v870, %v858
        %v1099 = vpack.c.b16 %v871, %v859
        %v1100 = vpack.c.b16 %v872, %v860
        %v1101 = vpack.c.b16 %v873, %v861
        %v1102 = vpack.c.b16 %v874, %v862
        %v1103 = vpack.c.b16 %v875, %v863
        %v1104 = vpack.c.b16 %v876, %v864
        %v1105 = vpack.c.b16 %v877, %v865
        %v1106 = vpack.c.b16 %v878, %v866
        %v1107 = vpack.c.b16 %v891, %v879
        %v1108 = vpack.c.b16 %v892, %v880
        %v1109 = vpack.c.b16 %v893, %v881
        %v1110 = vpack.c.b16 %v894, %v882
        %v1111 = vpack.c.b16 %v895, %v883
        %v1112 = vpack.c.b16 %v896, %v884
        %v1113 = vpack.c.b16 %v897, %v885
        %v1114 = vpack.c.b16 %v898, %v886
        %v1115 = vpack.c.b16 %v899, %v887
        %v1116 = vpack.c.b16 %v900, %v888
        %v1117 = vpack.c.b16 %v901, %v889
        %v1118 = vpack.c.b16 %v902, %v890
        %v1119 = vpack.c.b16 %v915, %v903
        %v1120 = vpack.c.b16 %v916, %v904
        %v1121 = vpack.c.b16 %v917, %v905
        %v1122 = vpack.c.b16 %v918, %v906
        %v1123 = vpack.c.b16 %v919, %v907
        %v1124 = vpack.c.b16 %v920, %v908
        %v1125 = vpack.c.b16 %v921, %v909
        %v1126 = vpack.c.b16 %v922, %v910
        %v1127 = vpack.c.b16 %v923, %v911
        %v1128 = vpack.c.b16 %v924, %v912
        %v1129 = vpack.c.b16 %v925, %v913
        %v1130 = vpack.c.b16 %v926, %v914
        %v1131 = vpack.c.b16 %v939, %v927
        %v1132 = vpack.c.b16 %v940, %v928
        %v1133 = vpack.c.b16 %v941, %v929
        %v1134 = vpack.c.b16 %v942, %v930
        %v1135 = vpack.c.b16 %v943, %v931
        %v1136 = vpack.c.b16 %v944, %v932
        %v1137 = vpack.c.b16 %v945, %v933
        %v1138 = vpack.c.b16 %v946, %v934
        %v1139 = vpack.c.b16 %v947, %v935
        %v1140 = vpack.c.b16 %v948, %v936
        %v1141 = vpack.c.b16 %v949, %v937
        %v1142 = vpack.c.b16 %v950, %v938
        %v1143 = vpack.c.b16 %v963, %v951
        %v1144 = vpack.c.b16 %v964, %v952
        %v1145 = vpack.c.b16 %v965, %v953
        %v1146 = vpack.c.b16 %v966, %v954
        %v1147 = vpack.c.b16 %v967, %v955
        %v1148 = vpack.c.b16 %v968, %v956
        %v1149 = vpack.c.b16 %v969, %v957
        %v1150 = vpack.c.b16 %v970, %v958
        %v1151 = vpack.c.b16 %v971, %v959
        %v1152 = vpack.c.b16 %v972, %v960
        %v1153 = vpack.c.b16 %v973, %v961
        %v1154 = vpack.c.b16 %v974, %v962
        %v1155 = vpack.c.b16 %v987, %v975
        %v1156 = vpack.c.b16 %v988, %v976
        %v1157 = vpack.c.b16 %v989, %v977
        %v1158 = vpack.c.b16 %v990, %v978
        %v1159 = vpack.c.b16 %v991, %v979
        %v1160 = vpack.c.b16 %v992, %v980
        %v1161 = vpack.c.b16 %v993, %v981
        %v1162 = vpack.c.b16 %v994, %v982
        %v1163 = vpack.c.b16 %v995, %v983
        %v1164 = vpack.c.b16 %v996, %v984
        %v1165 = vpack.c.b16 %v997, %v985
        %v1166 = vpack.c.b16 %v998, %v986
        %v1167 = vpack.c.b16 %v1011, %v999
        %v1168 = vpack.c.b16 %v1012, %v1000
        %v1169 = vpack.c.b16 %v1013, %v1001
        %v1170 = vpack.c.b16 %v1014, %v1002
        %v1171 = vpack.c.b16 %v1015, %v1003
        %v1172 = vpack.c.b16 %v1016, %v1004
        %v1173 = vpack.c.b16 %v1017, %v1005
        %v1174 = vpack.c.b16 %v1018, %v1006
        %v1175 = vpack.c.b16 %v1019, %v1007
        %v1176 = vpack.c.b16 %v1020, %v1008
        %v1177 = vpack.c.b16 %v1021, %v1009
        %v1178 = vpack.c.b16 %v1022, %v1010
        %v1179 = vpack.c.b16 %v1023, %v1023
        %v1180 = vpack.c.b16 %v1024, %v1024
        %v1181 = vpack.c.b16 %v1025, %v1025
        %v1182 = vpack.c.b16 %v1026, %v1026
        %v1183 = vpack.c.b16 %v1027, %v1027
        %v1184 = vpack.c.b16 %v1028, %v1028
        %v1185 = vpack.c.b16 %v1029, %v1029
        %v1186 = vpack.c.b16 %v1030, %v1030
        %v1187 = vpack.c.b16 %v1031, %v1031
        %v1188 = vpack.c.b16 %v1032, %v1032
        %v1189 = vpack.c.b16 %v1033, %v1033
        %v1190 = vpack.c.b16 %v1034, %v1034
        %v1539 = vunpack.c.l.b16 %v389
        %v1540 = vunpack.c.l.b16 %v390
        %v1541 = vunpack.c.l.b16 %v391
        %v1542 = vunpack.c.l.b16 %v392
        %v1543 = vunpack.c.l.b16 %v393
        %v1544 = vunpack.c.l.b16 %v394
        %v1545 = vunpack.c.l.b16 %v395
        %v1546 = vunpack.c.l.b16 %v396
        %v1547 = vunpack.c.l.b16 %v397
        %v1548 = vunpack.c.l.b16 %v398
        %v1549 = vunpack.c.l.b16 %v399
        %v1550 = vunpack.c.l.b16 %v400
        %v1551 = vunpack.c.l.b16 %v401
        %v1552 = vunpack.c.l.b16 %v402
        %v1553 = vunpack.c.l.b16 %v403
        %v1554 = vunpack.c.l.b16 %v404
        %v1555 = vunpack.c.l.b16 %v405
        %v1556 = vunpack.c.l.b16 %v406
        %v1557 = vunpack.c.l.b16 %v407
        %v1558 = vunpack.c.l.b16 %v408
        %v1559 = vunpack.c.l.b16 %v409
        %v1560 = vunpack.c.l.b16 %v410
        %v1561 = vunpack.c.l.b16 %v411
        %v1562 = vunpack.c.l.b16 %v412
        %v1563 = vunpack.c.l.b16 %v413
        %v1564 = vunpack.c.l.b16 %v414
        %v1565 = vunpack.c.l.b16 %v415
        %v1566 = vunpack.c.l.b16 %v416
        %v1567 = vunpack.c.l.b16 %v417
        %v1568 = vunpack.c.l.b16 %v418
        %v1569 = vunpack.c.l.b16 %v419
        %v1570 = vunpack.c.l.b16 %v420
        %v1571 = vunpack.c.l.b16 %v421
        %v1572 = vunpack.c.l.b16 %v422
        %v1573 = vunpack.c.l.b16 %v423
        %v1574 = vunpack.c.l.b16 %v424
        %v1575 = vunpack.c.l.b16 %v425
        %v1576 = vunpack.c.l.b16 %v426
        %v1577 = vunpack.c.l.b16 %v427
        %v1578 = vunpack.c.l.b16 %v428
        %v1579 = vunpack.c.l.b16 %v429
        %v1580 = vunpack.c.l.b16 %v430
        %v1581 = vunpack.c.l.b16 %v431
        %v1582 = vunpack.c.l.b16 %v432
        %v1583 = vunpack.c.l.b16 %v433
        %v1584 = vunpack.c.l.b16 %v434
        %v1585 = vunpack.c.l.b16 %v435
        %v1586 = vunpack.c.l.b16 %v436
        %v1587 = vunpack.c.l.b16 %v437
        %v1588 = vunpack.c.l.b16 %v438
        %v1589 = vunpack.c.l.b16 %v439
        %v1590 = vunpack.c.l.b16 %v440
        %v1591 = vunpack.c.l.b16 %v441
        %v1592 = vunpack.c.l.b16 %v442
        %v1593 = vunpack.c.l.b16 %v443
        %v1594 = vunpack.c.l.b16 %v444
        %v1595 = vunpack.c.l.b16 %v445
        %v1596 = vunpack.c.l.b16 %v446
        %v1597 = vunpack.c.l.b16 %v447
        %v1598 = vunpack.c.l.b16 %v448
        %v1599 = vunpack.c.l.b16 %v449
        %v1600 = vunpack.c.l.b16 %v450
        %v1601 = vunpack.c.l.b16 %v451
        %v1602 = vunpack.c.l.b16 %v452
        %v1603 = vunpack.c.l.b16 %v453
        %v1604 = vunpack.c.l.b16 %v454
        %v1605 = vunpack.c.l.b16 %v455
        %v1606 = vunpack.c.l.b16 %v456
        %v1607 = vunpack.c.l.b16 %v457
        %v1608 = vunpack.c.l.b16 %v458
        %v1609 = vunpack.c.l.b16 %v459
        %v1610 = vunpack.c.l.b16 %v460
        %v1611 = vunpack.c.l.b16 %v461
        %v1612 = vunpack.c.l.b16 %v462
        %v1613 = vunpack.c.l.b16 %v463
        %v1614 = vunpack.c.l.b16 %v464
        %v1615 = vunpack.c.l.b16 %v465
        %v1616 = vunpack.c.l.b16 %v466
        %v1617 = vunpack.c.l.b16 %v467
        %v1618 = vunpack.c.l.b16 %v468
        %v1619 = vunpack.c.l.b16 %v469
        %v1620 = vunpack.c.l.b16 %v470
        %v1621 = vunpack.c.l.b16 %v471
        %v1622 = vunpack.c.l.b16 %v472
        %v1623 = vunpack.c.l.b16 %v473
        %v1624 = vunpack.c.l.b16 %v474
        %v1625 = vunpack.c.l.b16 %v475
        %v1626 = vunpack.c.l.b16 %v476
        %v1627 = vunpack.c.l.b16 %v477
        %v1628 = vunpack.c.l.b16 %v478
        %v1629 = vunpack.c.l.b16 %v479
        %v1630 = vunpack.c.l.b16 %v480
        %v1631 = vunpack.c.l.b16 %v481
        %v1632 = vunpack.c.l.b16 %v482
        %v1633 = vunpack.c.l.b16 %v483
        %v1634 = vunpack.c.l.b16 %v484
        %v1635 = vunpack.c.l.b16 %v485
        %v1636 = vunpack.c.l.b16 %v486
        %v1637 = vunpack.c.l.b16 %v487
        %v1638 = vunpack.c.l.b16 %v488
        %v1639 = vunpack.c.l.b16 %v489
        %v1640 = vunpack.c.l.b16 %v490
        %v1641 = vunpack.c.l.b16 %v491
        %v1642 = vunpack.c.l.b16 %v492
        %v1643 = vunpack.c.l.b16 %v493
        %v1644 = vunpack.c.l.b16 %v494
        %v1645 = vunpack.c.l.b16 %v495
        %v1646 = vunpack.c.l.b16 %v496
        %v1647 = vunpack.c.l.b16 %v497
        %v1648 = vunpack.c.l.b16 %v498
        %v1649 = vunpack.c.l.b16 %v499
        %v1650 = vunpack.c.l.b16 %v500
        %v1651 = vunpack.c.l.b16 %v501
        %v1652 = vunpack.c.l.b16 %v502
        %v1653 = vunpack.c.l.b16 %v503
        %v1654 = vunpack.c.l.b16 %v504
        %v1655 = vunpack.c.l.b16 %v505
        %v1656 = vunpack.c.l.b16 %v506
        %v1657 = vunpack.c.l.b16 %v507
        %v1658 = vunpack.c.l.b16 %v508
        %v1659 = vunpack.c.l.b16 %v509
        %v1660 = vunpack.c.l.b16 %v510
        %v1661 = vunpack.c.l.b16 %v511
        %v1662 = vunpack.c.l.b16 %v512
        %v1663 = vunpack.c.l.b16 %v513
        %v1664 = vunpack.c.l.b16 %v514
        %v1665 = vunpack.c.l.b16 %v515
        %v1666 = vunpack.c.l.b16 %v516
        %v1667 = vunpack.c.l.b16 %v517
        %v1668 = vunpack.c.l.b16 %v518
        %v1669 = vunpack.c.l.b16 %v519
        %v1670 = vunpack.c.l.b16 %v520
        %v1671 = vunpack.c.l.b16 %v521
        %v1672 = vunpack.c.l.b16 %v522
        %v1673 = vunpack.c.l.b16 %v523
        %v1674 = vunpack.c.l.b16 %v524
        %v1675 = vunpack.c.l.b16 %v525
        %v1676 = vunpack.c.l.b16 %v526
        %v1677 = vunpack.c.l.b16 %v527
        %v1678 = vunpack.c.l.b16 %v528
        %v1679 = vunpack.c.l.b16 %v529
        %v1680 = vunpack.c.l.b16 %v530
        %v1681 = vunpack.c.l.b16 %v531
        %v1682 = vunpack.c.l.b16 %v532
        %v1683 = vunpack.c.l.b16 %v533
        %v1684 = vunpack.c.l.b16 %v534
        %v1685 = vunpack.c.l.b16 %v535
        %v1686 = vunpack.c.l.b16 %v536
        %v1687 = vunpack.c.l.b16 %v537
        %v1688 = vunpack.c.l.b16 %v538
        %v1689 = vunpack.c.l.b16 %v539
        %v1690 = vunpack.c.l.b16 %v540
        %v1691 = vunpack.c.l.b16 %v541
        %v1692 = vunpack.c.l.b16 %v542
        %v1693 = vunpack.c.l.b16 %v543
        %v1694 = vunpack.c.l.b16 %v544
        %v1695 = vunpack.c.l.b16 %v545
        %v1696 = vunpack.c.l.b16 %v546
        %v1697 = vunpack.c.l.b16 %v547
        %v1698 = vunpack.c.l.b16 %v548
        %v1699 = vunpack.c.l.b16 %v549
        %v1700 = vunpack.c.l.b16 %v550
        %v1701 = vunpack.c.l.b16 %v551
        %v1702 = vunpack.c.l.b16 %v552
        %v1703 = vunpack.c.l.b16 %v553
        %v1704 = vunpack.c.l.b16 %v554
        %v1705 = vunpack.c.l.b16 %v555
        %v1706 = vunpack.c.l.b16 %v556
        %v1707 = vunpack.c.l.b16 %v557
        %v1708 = vunpack.c.l.b16 %v558
        %v1709 = vunpack.c.l.b16 %v559
        %v1710 = vunpack.c.l.b16 %v560
        %v1711 = vunpack.c.l.b16 %v561
        %v1712 = vunpack.c.l.b16 %v562
        %v1713 = vunpack.c.l.b16 %v563
        %v1714 = vunpack.c.l.b16 %v564
        %v1715 = vunpack.c.l.b16 %v565
        %v1716 = vunpack.c.l.b16 %v566
        %v1717 = vunpack.c.l.b16 %v567
        %v1718 = vunpack.c.l.b16 %v568
        %v1719 = vunpack.c.l.b16 %v569
        %v1720 = vunpack.c.l.b16 %v570
        %v1721 = vunpack.c.l.b16 %v571
        %v1722 = vunpack.c.l.b16 %v572
        %v1723 = vunpack.c.l.b16 %v573
        %v1724 = vunpack.c.l.b16 %v574
        %v1725 = vunpack.c.l.b16 %v575
        %v1726 = vunpack.c.l.b16 %v576
        %v1727 = vunpack.c.l.b16 %v577
        %v1728 = vunpack.c.l.b16 %v578
        %v1729 = vunpack.c.l.b16 %v579
        %v1730 = vunpack.c.l.b16 %v580
        %v1731 = vpack.c.b16 %v1540, %v1539
        %v1732 = vpack.c.b16 %v1542, %v1541
        %v1733 = vpack.c.b16 %v1544, %v1543
        %v1734 = vpack.c.b16 %v1546, %v1545
        %v1735 = vpack.c.b16 %v1548, %v1547
        %v1736 = vpack.c.b16 %v1550, %v1549
        %v1737 = vpack.c.b16 %v1552, %v1551
        %v1738 = vpack.c.b16 %v1554, %v1553
        %v1739 = vpack.c.b16 %v1556, %v1555
        %v1740 = vpack.c.b16 %v1558, %v1557
        %v1741 = vpack.c.b16 %v1560, %v1559
        %v1742 = vpack.c.b16 %v1562, %v1561
        %v1743 = vpack.c.b16 %v1564, %v1563
        %v1744 = vpack.c.b16 %v1566, %v1565
        %v1745 = vpack.c.b16 %v1568, %v1567
        %v1746 = vpack.c.b16 %v1570, %v1569
        %v1747 = vpack.c.b16 %v1572, %v1571
        %v1748 = vpack.c.b16 %v1574, %v1573
        %v1749 = vpack.c.b16 %v1576, %v1575
        %v1750 = vpack.c.b16 %v1578, %v1577
        %v1751 = vpack.c.b16 %v1580, %v1579
        %v1752 = vpack.c.b16 %v1582, %v1581
        %v1753 = vpack.c.b16 %v1584, %v1583
        %v1754 = vpack.c.b16 %v1586, %v1585
        %v1755 = vpack.c.b16 %v1588, %v1587
        %v1756 = vpack.c.b16 %v1590, %v1589
        %v1757 = vpack.c.b16 %v1592, %v1591
        %v1758 = vpack.c.b16 %v1594, %v1593
        %v1759 = vpack.c.b16 %v1596, %v1595
        %v1760 = vpack.c.b16 %v1598, %v1597
        %v1761 = vpack.c.b16 %v1600, %v1599
        %v1762 = vpack.c.b16 %v1602, %v1601
        %v1763 = vpack.c.b16 %v1604, %v1603
        %v1764 = vpack.c.b16 %v1606, %v1605
        %v1765 = vpack.c.b16 %v1608, %v1607
        %v1766 = vpack.c.b16 %v1610, %v1609
        %v1767 = vpack.c.b16 %v1612, %v1611
        %v1768 = vpack.c.b16 %v1614, %v1613
        %v1769 = vpack.c.b16 %v1616, %v1615
        %v1770 = vpack.c.b16 %v1618, %v1617
        %v1771 = vpack.c.b16 %v1620, %v1619
        %v1772 = vpack.c.b16 %v1622, %v1621
        %v1773 = vpack.c.b16 %v1624, %v1623
        %v1774 = vpack.c.b16 %v1626, %v1625
        %v1775 = vpack.c.b16 %v1628, %v1627
        %v1776 = vpack.c.b16 %v1630, %v1629
        %v1777 = vpack.c.b16 %v1632, %v1631
        %v1778 = vpack.c.b16 %v1634, %v1633
        %v1779 = vpack.c.b16 %v1636, %v1635
        %v1780 = vpack.c.b16 %v1638, %v1637
        %v1781 = vpack.c.b16 %v1640, %v1639
        %v1782 = vpack.c.b16 %v1642, %v1641
        %v1783 = vpack.c.b16 %v1644, %v1643
        %v1784 = vpack.c.b16 %v1646, %v1645
        %v1785 = vpack.c.b16 %v1648, %v1647
        %v1786 = vpack.c.b16 %v1650, %v1649
        %v1787 = vpack.c.b16 %v1652, %v1651
        %v1788 = vpack.c.b16 %v1654, %v1653
        %v1789 = vpack.c.b16 %v1656, %v1655
        %v1790 = vpack.c.b16 %v1658, %v1657
        %v1791 = vpack.c.b16 %v1660, %v1659
        %v1792 = vpack.c.b16 %v1662, %v1661
        %v1793 = vpack.c.b16 %v1664, %v1663
        %v1794 = vpack.c.b16 %v1666, %v1665
        %v1795 = vpack.c.b16 %v1668, %v1667
        %v1796 = vpack.c.b16 %v1670, %v1669
        %v1797 = vpack.c.b16 %v1672, %v1671
        %v1798 = vpack.c.b16 %v1674, %v1673
        %v1799 = vpack.c.b16 %v1676, %v1675
        %v1800 = vpack.c.b16 %v1678, %v1677
        %v1801 = vpack.c.b16 %v1680, %v1679
        %v1802 = vpack.c.b16 %v1682, %v1681
        %v1803 = vpack.c.b16 %v1684, %v1683
        %v1804 = vpack.c.b16 %v1686, %v1685
        %v1805 = vpack.c.b16 %v1688, %v1687
        %v1806 = vpack.c.b16 %v1690, %v1689
        %v1807 = vpack.c.b16 %v1692, %v1691
        %v1808 = vpack.c.b16 %v1694, %v1693
        %v1809 = vpack.c.b16 %v1696, %v1695
        %v1810 = vpack.c.b16 %v1698, %v1697
        %v1811 = vpack.c.b16 %v1700, %v1699
        %v1812 = vpack.c.b16 %v1702, %v1701
        %v1813 = vpack.c.b16 %v1704, %v1703
        %v1814 = vpack.c.b16 %v1706, %v1705
        %v1815 = vpack.c.b16 %v1708, %v1707
        %v1816 = vpack.c.b16 %v1710, %v1709
        %v1817 = vpack.c.b16 %v1712, %v1711
        %v1818 = vpack.c.b16 %v1714, %v1713
        %v1819 = vpack.c.b16 %v1716, %v1715
        %v1820 = vpack.c.b16 %v1718, %v1717
        %v1821 = vpack.c.b16 %v1720, %v1719
        %v1822 = vpack.c.b16 %v1722, %v1721
        %v1823 = vpack.c.b16 %v1724, %v1723
        %v1824 = vpack.c.b16 %v1726, %v1725
        %v1825 = vpack.c.b16 %v1728, %v1727
        %v1826 = vpack.c.b16 %v1730, %v1729
        %1923 = vmatpush.bf16.msra.mxu0 %v1738
        %1924 = vmatpush.bf16.msra.mxu0 %v1737
        %1925 = vmatpush.bf16.msra.mxu0 %v1736
        %1926 = vmatpush.bf16.msra.mxu0 %v1735
        %1927 = vmatpush.bf16.msra.mxu0 %v1734
        %1928 = vmatpush.bf16.msra.mxu0 %v1733
        %1929 = vmatpush.bf16.msra.mxu0 %v1732
        %1930 = vmatpush.bf16.msra.mxu0 %v1731
        %1931 = vmatmul.bf16.gmra.mxu0 %v1035
        %v1932 = vpop.f32.mrf.mxu0
        %v1933 = vadd.f32 %v583, %v1932
        %v1934 = vpop.f32.mrf.mxu0
        %v1935 = vadd.f32 %v583, %v1934
        %1936 = vmatmul.bf16.gmra.mxu0 %v1047
        %v1937 = vpop.f32.mrf.mxu0
        %v1938 = vadd.f32 %v583, %v1937
        %v1939 = vpop.f32.mrf.mxu0
        %v1940 = vadd.f32 %v583, %v1939
        %1941 = vmatmul.bf16.gmra.mxu0 %v1059
        %v1942 = vpop.f32.mrf.mxu0
        %v1943 = vadd.f32 %v583, %v1942
        %v1944 = vpop.f32.mrf.mxu0
        %v1945 = vadd.f32 %v583, %v1944
        %1946 = vmatmul.bf16.gmra.mxu0 %v1071
        %v1947 = vpop.f32.mrf.mxu0
        %v1948 = vadd.f32 %v583, %v1947
        %v1949 = vpop.f32.mrf.mxu0
        %v1950 = vadd.f32 %v583, %v1949
        %1951 = vmatmul.bf16.gmra.mxu0 %v1083
        %v1952 = vpop.f32.mrf.mxu0
        %v1953 = vadd.f32 %v583, %v1952
        %v1954 = vpop.f32.mrf.mxu0
        %v1955 = vadd.f32 %v583, %v1954
        %1956 = vmatmul.bf16.gmra.mxu0 %v1095
        %v1957 = vpop.f32.mrf.mxu0
        %v1958 = vadd.f32 %v583, %v1957
        %v1959 = vpop.f32.mrf.mxu0
        %v1960 = vadd.f32 %v583, %v1959
        %1961 = vmatmul.bf16.gmra.mxu0 %v1107
        %v1962 = vpop.f32.mrf.mxu0
        %v1963 = vadd.f32 %v583, %v1962
        %v1964 = vpop.f32.mrf.mxu0
        %v1965 = vadd.f32 %v583, %v1964
        %1966 = vmatmul.bf16.gmra.mxu0 %v1119
        %v1967 = vpop.f32.mrf.mxu0
        %v1968 = vadd.f32 %v583, %v1967
        %v1969 = vpop.f32.mrf.mxu0
        %v1970 = vadd.f32 %v583, %v1969
        %1971 = vmatmul.bf16.gmra.mxu0 %v1131
        %v1972 = vpop.f32.mrf.mxu0
        %v1973 = vadd.f32 %v583, %v1972
        %v1974 = vpop.f32.mrf.mxu0
        %v1975 = vadd.f32 %v583, %v1974
        %1976 = vmatmul.bf16.gmra.mxu0 %v1143
        %v1977 = vpop.f32.mrf.mxu0
        %v1978 = vadd.f32 %v583, %v1977
        %v1979 = vpop.f32.mrf.mxu0
        %v1980 = vadd.f32 %v583, %v1979
        %1981 = vmatmul.bf16.gmra.mxu0 %v1155
        %v1982 = vpop.f32.mrf.mxu0
        %v1983 = vadd.f32 %v583, %v1982
        %v1984 = vpop.f32.mrf.mxu0
        %v1985 = vadd.f32 %v583, %v1984
        %1986 = vmatmul.bf16.gmra.mxu0 %v1167
        %v1987 = vpop.f32.mrf.mxu0
        %v1988 = vadd.f32 %v583, %v1987
        %v1989 = vpop.f32.mrf.mxu0
        %v1990 = vadd.f32 %v583, %v1989
        %1991 = vmatmul.bf16.gmra.mxu0 %v1179
        %v1992 = vpop.f32.mrf.mxu0
        %v1993 = vadd.f32 %v583, %v1992
        %v1994 = vpop.f32.mrf.mxu0
        %1995 = vdwg.mxu0
        %1996 = vmatpush.bf16.msra.mxu0 %v1746
        %1997 = vmatpush.bf16.msra.mxu0 %v1745
        %1998 = vmatpush.bf16.msra.mxu0 %v1744
        %1999 = vmatpush.bf16.msra.mxu0 %v1743
        %2000 = vmatpush.bf16.msra.mxu0 %v1742
        %2001 = vmatpush.bf16.msra.mxu0 %v1741
        %2002 = vmatpush.bf16.msra.mxu0 %v1740
        %2003 = vmatpush.bf16.msra.mxu0 %v1739
        %2004 = vmatmul.bf16.gmra.mxu0 %v1036
        %v2005 = vpop.f32.mrf.mxu0
        %v2006 = vadd.f32 %v1933, %v2005
        %v2007 = vpop.f32.mrf.mxu0
        %v2008 = vadd.f32 %v1935, %v2007
        %2009 = vmatmul.bf16.gmra.mxu0 %v1048
        %v2010 = vpop.f32.mrf.mxu0
        %v2011 = vadd.f32 %v1938, %v2010
        %v2012 = vpop.f32.mrf.mxu0
        %v2013 = vadd.f32 %v1940, %v2012
        %2014 = vmatmul.bf16.gmra.mxu0 %v1060
        %v2015 = vpop.f32.mrf.mxu0
        %v2016 = vadd.f32 %v1943, %v2015
        %v2017 = vpop.f32.mrf.mxu0
        %v2018 = vadd.f32 %v1945, %v2017
        %2019 = vmatmul.bf16.gmra.mxu0 %v1072
        %v2020 = vpop.f32.mrf.mxu0
        %v2021 = vadd.f32 %v1948, %v2020
        %v2022 = vpop.f32.mrf.mxu0
        %v2023 = vadd.f32 %v1950, %v2022
        %2024 = vmatmul.bf16.gmra.mxu0 %v1084
        %v2025 = vpop.f32.mrf.mxu0
        %v2026 = vadd.f32 %v1953, %v2025
        %v2027 = vpop.f32.mrf.mxu0
        %v2028 = vadd.f32 %v1955, %v2027
        %2029 = vmatmul.bf16.gmra.mxu0 %v1096
        %v2030 = vpop.f32.mrf.mxu0
        %v2031 = vadd.f32 %v1958, %v2030
        %v2032 = vpop.f32.mrf.mxu0
        %v2033 = vadd.f32 %v1960, %v2032
        %2034 = vmatmul.bf16.gmra.mxu0 %v1108
        %v2035 = vpop.f32.mrf.mxu0
        %v2036 = vadd.f32 %v1963, %v2035
        %v2037 = vpop.f32.mrf.mxu0
        %v2038 = vadd.f32 %v1965, %v2037
        %2039 = vmatmul.bf16.gmra.mxu0 %v1120
        %v2040 = vpop.f32.mrf.mxu0
        %v2041 = vadd.f32 %v1968, %v2040
        %v2042 = vpop.f32.mrf.mxu0
        %v2043 = vadd.f32 %v1970, %v2042
        %2044 = vmatmul.bf16.gmra.mxu0 %v1132
        %v2045 = vpop.f32.mrf.mxu0
        %v2046 = vadd.f32 %v1973, %v2045
        %v2047 = vpop.f32.mrf.mxu0
        %v2048 = vadd.f32 %v1975, %v2047
        %2049 = vmatmul.bf16.gmra.mxu0 %v1144
        %v2050 = vpop.f32.mrf.mxu0
        %v2051 = vadd.f32 %v1978, %v2050
        %v2052 = vpop.f32.mrf.mxu0
        %v2053 = vadd.f32 %v1980, %v2052
        %2054 = vmatmul.bf16.gmra.mxu0 %v1156
        %v2055 = vpop.f32.mrf.mxu0
        %v2056 = vadd.f32 %v1983, %v2055
        %v2057 = vpop.f32.mrf.mxu0
        %v2058 = vadd.f32 %v1985, %v2057
        %2059 = vmatmul.bf16.gmra.mxu0 %v1168
        %v2060 = vpop.f32.mrf.mxu0
        %v2061 = vadd.f32 %v1988, %v2060
        %v2062 = vpop.f32.mrf.mxu0
        %v2063 = vadd.f32 %v1990, %v2062
        %2064 = vmatmul.bf16.gmra.mxu0 %v1180
        %v2065 = vpop.f32.mrf.mxu0
        %v2066 = vadd.f32 %v1993, %v2065
        %v2067 = vpop.f32.mrf.mxu0
        %2068 = vdwg.mxu0
        %2069 = vmatpush.bf16.msra.mxu0 %v1754
        %2070 = vmatpush.bf16.msra.mxu0 %v1753
        %2071 = vmatpush.bf16.msra.mxu0 %v1752
        %2072 = vmatpush.bf16.msra.mxu0 %v1751
        %2073 = vmatpush.bf16.msra.mxu0 %v1750
        %2074 = vmatpush.bf16.msra.mxu0 %v1749
        %2075 = vmatpush.bf16.msra.mxu0 %v1748
        %2076 = vmatpush.bf16.msra.mxu0 %v1747
        %2077 = vmatmul.bf16.gmra.mxu0 %v1037
        %v2078 = vpop.f32.mrf.mxu0
        %v2079 = vadd.f32 %v2006, %v2078
        %v2080 = vpop.f32.mrf.mxu0
        %v2081 = vadd.f32 %v2008, %v2080
        %2082 = vmatmul.bf16.gmra.mxu0 %v1049
        %v2083 = vpop.f32.mrf.mxu0
        %v2084 = vadd.f32 %v2011, %v2083
        %v2085 = vpop.f32.mrf.mxu0
        %v2086 = vadd.f32 %v2013, %v2085
        %2087 = vmatmul.bf16.gmra.mxu0 %v1061
        %v2088 = vpop.f32.mrf.mxu0
        %v2089 = vadd.f32 %v2016, %v2088
        %v2090 = vpop.f32.mrf.mxu0
        %v2091 = vadd.f32 %v2018, %v2090
        %2092 = vmatmul.bf16.gmra.mxu0 %v1073
        %v2093 = vpop.f32.mrf.mxu0
        %v2094 = vadd.f32 %v2021, %v2093
        %v2095 = vpop.f32.mrf.mxu0
        %v2096 = vadd.f32 %v2023, %v2095
        %2097 = vmatmul.bf16.gmra.mxu0 %v1085
        %v2098 = vpop.f32.mrf.mxu0
        %v2099 = vadd.f32 %v2026, %v2098
        %v2100 = vpop.f32.mrf.mxu0
        %v2101 = vadd.f32 %v2028, %v2100
        %2102 = vmatmul.bf16.gmra.mxu0 %v1097
        %v2103 = vpop.f32.mrf.mxu0
        %v2104 = vadd.f32 %v2031, %v2103
        %v2105 = vpop.f32.mrf.mxu0
        %v2106 = vadd.f32 %v2033, %v2105
        %2107 = vmatmul.bf16.gmra.mxu0 %v1109
        %v2108 = vpop.f32.mrf.mxu0
        %v2109 = vadd.f32 %v2036, %v2108
        %v2110 = vpop.f32.mrf.mxu0
        %v2111 = vadd.f32 %v2038, %v2110
        %2112 = vmatmul.bf16.gmra.mxu0 %v1121
        %v2113 = vpop.f32.mrf.mxu0
        %v2114 = vadd.f32 %v2041, %v2113
        %v2115 = vpop.f32.mrf.mxu0
        %v2116 = vadd.f32 %v2043, %v2115
        %2117 = vmatmul.bf16.gmra.mxu0 %v1133
        %v2118 = vpop.f32.mrf.mxu0
        %v2119 = vadd.f32 %v2046, %v2118
        %v2120 = vpop.f32.mrf.mxu0
        %v2121 = vadd.f32 %v2048, %v2120
        %2122 = vmatmul.bf16.gmra.mxu0 %v1145
        %v2123 = vpop.f32.mrf.mxu0
        %v2124 = vadd.f32 %v2051, %v2123
        %v2125 = vpop.f32.mrf.mxu0
        %v2126 = vadd.f32 %v2053, %v2125
        %2127 = vmatmul.bf16.gmra.mxu0 %v1157
        %v2128 = vpop.f32.mrf.mxu0
        %v2129 = vadd.f32 %v2056, %v2128
        %v2130 = vpop.f32.mrf.mxu0
        %v2131 = vadd.f32 %v2058, %v2130
        %2132 = vmatmul.bf16.gmra.mxu0 %v1169
        %v2133 = vpop.f32.mrf.mxu0
        %v2134 = vadd.f32 %v2061, %v2133
        %v2135 = vpop.f32.mrf.mxu0
        %v2136 = vadd.f32 %v2063, %v2135
        %2137 = vmatmul.bf16.gmra.mxu0 %v1181
        %v2138 = vpop.f32.mrf.mxu0
        %v2139 = vadd.f32 %v2066, %v2138
        %v2140 = vpop.f32.mrf.mxu0
        %2141 = vdwg.mxu0
        %2142 = vmatpush.bf16.msra.mxu0 %v1762
        %2143 = vmatpush.bf16.msra.mxu0 %v1761
        %2144 = vmatpush.bf16.msra.mxu0 %v1760
        %2145 = vmatpush.bf16.msra.mxu0 %v1759
        %2146 = vmatpush.bf16.msra.mxu0 %v1758
        %2147 = vmatpush.bf16.msra.mxu0 %v1757
        %2148 = vmatpush.bf16.msra.mxu0 %v1756
        %2149 = vmatpush.bf16.msra.mxu0 %v1755
        %2150 = vmatmul.bf16.gmra.mxu0 %v1038
        %v2151 = vpop.f32.mrf.mxu0
        %v2152 = vadd.f32 %v2079, %v2151
        %v2153 = vpop.f32.mrf.mxu0
        %v2154 = vadd.f32 %v2081, %v2153
        %2155 = vmatmul.bf16.gmra.mxu0 %v1050
        %v2156 = vpop.f32.mrf.mxu0
        %v2157 = vadd.f32 %v2084, %v2156
        %v2158 = vpop.f32.mrf.mxu0
        %v2159 = vadd.f32 %v2086, %v2158
        %2160 = vmatmul.bf16.gmra.mxu0 %v1062
        %v2161 = vpop.f32.mrf.mxu0
        %v2162 = vadd.f32 %v2089, %v2161
        %v2163 = vpop.f32.mrf.mxu0
        %v2164 = vadd.f32 %v2091, %v2163
        %2165 = vmatmul.bf16.gmra.mxu0 %v1074
        %v2166 = vpop.f32.mrf.mxu0
        %v2167 = vadd.f32 %v2094, %v2166
        %v2168 = vpop.f32.mrf.mxu0
        %v2169 = vadd.f32 %v2096, %v2168
        %2170 = vmatmul.bf16.gmra.mxu0 %v1086
        %v2171 = vpop.f32.mrf.mxu0
        %v2172 = vadd.f32 %v2099, %v2171
        %v2173 = vpop.f32.mrf.mxu0
        %v2174 = vadd.f32 %v2101, %v2173
        %2175 = vmatmul.bf16.gmra.mxu0 %v1098
        %v2176 = vpop.f32.mrf.mxu0
        %v2177 = vadd.f32 %v2104, %v2176
        %v2178 = vpop.f32.mrf.mxu0
        %v2179 = vadd.f32 %v2106, %v2178
        %2180 = vmatmul.bf16.gmra.mxu0 %v1110
        %v2181 = vpop.f32.mrf.mxu0
        %v2182 = vadd.f32 %v2109, %v2181
        %v2183 = vpop.f32.mrf.mxu0
        %v2184 = vadd.f32 %v2111, %v2183
        %2185 = vmatmul.bf16.gmra.mxu0 %v1122
        %v2186 = vpop.f32.mrf.mxu0
        %v2187 = vadd.f32 %v2114, %v2186
        %v2188 = vpop.f32.mrf.mxu0
        %v2189 = vadd.f32 %v2116, %v2188
        %2190 = vmatmul.bf16.gmra.mxu0 %v1134
        %v2191 = vpop.f32.mrf.mxu0
        %v2192 = vadd.f32 %v2119, %v2191
        %v2193 = vpop.f32.mrf.mxu0
        %v2194 = vadd.f32 %v2121, %v2193
        %2195 = vmatmul.bf16.gmra.mxu0 %v1146
        %v2196 = vpop.f32.mrf.mxu0
        %v2197 = vadd.f32 %v2124, %v2196
        %v2198 = vpop.f32.mrf.mxu0
        %v2199 = vadd.f32 %v2126, %v2198
        %2200 = vmatmul.bf16.gmra.mxu0 %v1158
        %v2201 = vpop.f32.mrf.mxu0
        %v2202 = vadd.f32 %v2129, %v2201
        %v2203 = vpop.f32.mrf.mxu0
        %v2204 = vadd.f32 %v2131, %v2203
        %2205 = vmatmul.bf16.gmra.mxu0 %v1170
        %v2206 = vpop.f32.mrf.mxu0
        %v2207 = vadd.f32 %v2134, %v2206
        %v2208 = vpop.f32.mrf.mxu0
        %v2209 = vadd.f32 %v2136, %v2208
        %2210 = vmatmul.bf16.gmra.mxu0 %v1182
        %v2211 = vpop.f32.mrf.mxu0
        %v2212 = vadd.f32 %v2139, %v2211
        %v2213 = vpop.f32.mrf.mxu0
        %2214 = vdwg.mxu0
        %2215 = vmatpush.bf16.msra.mxu0 %v1770
        %2216 = vmatpush.bf16.msra.mxu0 %v1769
        %2217 = vmatpush.bf16.msra.mxu0 %v1768
        %2218 = vmatpush.bf16.msra.mxu0 %v1767
        %2219 = vmatpush.bf16.msra.mxu0 %v1766
        %2220 = vmatpush.bf16.msra.mxu0 %v1765
        %2221 = vmatpush.bf16.msra.mxu0 %v1764
        %2222 = vmatpush.bf16.msra.mxu0 %v1763
        %2223 = vmatmul.bf16.gmra.mxu0 %v1039
        %v2224 = vpop.f32.mrf.mxu0
        %v2225 = vadd.f32 %v2152, %v2224
        %v2226 = vpop.f32.mrf.mxu0
        %v2227 = vadd.f32 %v2154, %v2226
        %2228 = vmatmul.bf16.gmra.mxu0 %v1051
        %v2229 = vpop.f32.mrf.mxu0
        %v2230 = vadd.f32 %v2157, %v2229
        %v2231 = vpop.f32.mrf.mxu0
        %v2232 = vadd.f32 %v2159, %v2231
        %2233 = vmatmul.bf16.gmra.mxu0 %v1063
        %v2234 = vpop.f32.mrf.mxu0
        %v2235 = vadd.f32 %v2162, %v2234
        %v2236 = vpop.f32.mrf.mxu0
        %v2237 = vadd.f32 %v2164, %v2236
        %2238 = vmatmul.bf16.gmra.mxu0 %v1075
        %v2239 = vpop.f32.mrf.mxu0
        %v2240 = vadd.f32 %v2167, %v2239
        %v2241 = vpop.f32.mrf.mxu0
        %v2242 = vadd.f32 %v2169, %v2241
        %2243 = vmatmul.bf16.gmra.mxu0 %v1087
        %v2244 = vpop.f32.mrf.mxu0
        %v2245 = vadd.f32 %v2172, %v2244
        %v2246 = vpop.f32.mrf.mxu0
        %v2247 = vadd.f32 %v2174, %v2246
        %2248 = vmatmul.bf16.gmra.mxu0 %v1099
        %v2249 = vpop.f32.mrf.mxu0
        %v2250 = vadd.f32 %v2177, %v2249
        %v2251 = vpop.f32.mrf.mxu0
        %v2252 = vadd.f32 %v2179, %v2251
        %2253 = vmatmul.bf16.gmra.mxu0 %v1111
        %v2254 = vpop.f32.mrf.mxu0
        %v2255 = vadd.f32 %v2182, %v2254
        %v2256 = vpop.f32.mrf.mxu0
        %v2257 = vadd.f32 %v2184, %v2256
        %2258 = vmatmul.bf16.gmra.mxu0 %v1123
        %v2259 = vpop.f32.mrf.mxu0
        %v2260 = vadd.f32 %v2187, %v2259
        %v2261 = vpop.f32.mrf.mxu0
        %v2262 = vadd.f32 %v2189, %v2261
        %2263 = vmatmul.bf16.gmra.mxu0 %v1135
        %v2264 = vpop.f32.mrf.mxu0
        %v2265 = vadd.f32 %v2192, %v2264
        %v2266 = vpop.f32.mrf.mxu0
        %v2267 = vadd.f32 %v2194, %v2266
        %2268 = vmatmul.bf16.gmra.mxu0 %v1147
        %v2269 = vpop.f32.mrf.mxu0
        %v2270 = vadd.f32 %v2197, %v2269
        %v2271 = vpop.f32.mrf.mxu0
        %v2272 = vadd.f32 %v2199, %v2271
        %2273 = vmatmul.bf16.gmra.mxu0 %v1159
        %v2274 = vpop.f32.mrf.mxu0
        %v2275 = vadd.f32 %v2202, %v2274
        %v2276 = vpop.f32.mrf.mxu0
        %v2277 = vadd.f32 %v2204, %v2276
        %2278 = vmatmul.bf16.gmra.mxu0 %v1171
        %v2279 = vpop.f32.mrf.mxu0
        %v2280 = vadd.f32 %v2207, %v2279
        %v2281 = vpop.f32.mrf.mxu0
        %v2282 = vadd.f32 %v2209, %v2281
        %2283 = vmatmul.bf16.gmra.mxu0 %v1183
        %v2284 = vpop.f32.mrf.mxu0
        %v2285 = vadd.f32 %v2212, %v2284
        %v2286 = vpop.f32.mrf.mxu0
        %2287 = vdwg.mxu0
        %2288 = vmatpush.bf16.msra.mxu0 %v1778
        %2289 = vmatpush.bf16.msra.mxu0 %v1777
        %2290 = vmatpush.bf16.msra.mxu0 %v1776
        %2291 = vmatpush.bf16.msra.mxu0 %v1775
        %2292 = vmatpush.bf16.msra.mxu0 %v1774
        %2293 = vmatpush.bf16.msra.mxu0 %v1773
        %2294 = vmatpush.bf16.msra.mxu0 %v1772
        %2295 = vmatpush.bf16.msra.mxu0 %v1771
        %2296 = vmatmul.bf16.gmra.mxu0 %v1040
        %v2297 = vpop.f32.mrf.mxu0
        %v2298 = vadd.f32 %v2225, %v2297
        %v2299 = vpop.f32.mrf.mxu0
        %v2300 = vadd.f32 %v2227, %v2299
        %2301 = vmatmul.bf16.gmra.mxu0 %v1052
        %v2302 = vpop.f32.mrf.mxu0
        %v2303 = vadd.f32 %v2230, %v2302
        %v2304 = vpop.f32.mrf.mxu0
        %v2305 = vadd.f32 %v2232, %v2304
        %2306 = vmatmul.bf16.gmra.mxu0 %v1064
        %v2307 = vpop.f32.mrf.mxu0
        %v2308 = vadd.f32 %v2235, %v2307
        %v2309 = vpop.f32.mrf.mxu0
        %v2310 = vadd.f32 %v2237, %v2309
        %2311 = vmatmul.bf16.gmra.mxu0 %v1076
        %v2312 = vpop.f32.mrf.mxu0
        %v2313 = vadd.f32 %v2240, %v2312
        %v2314 = vpop.f32.mrf.mxu0
        %v2315 = vadd.f32 %v2242, %v2314
        %2316 = vmatmul.bf16.gmra.mxu0 %v1088
        %v2317 = vpop.f32.mrf.mxu0
        %v2318 = vadd.f32 %v2245, %v2317
        %v2319 = vpop.f32.mrf.mxu0
        %v2320 = vadd.f32 %v2247, %v2319
        %2321 = vmatmul.bf16.gmra.mxu0 %v1100
        %v2322 = vpop.f32.mrf.mxu0
        %v2323 = vadd.f32 %v2250, %v2322
        %v2324 = vpop.f32.mrf.mxu0
        %v2325 = vadd.f32 %v2252, %v2324
        %2326 = vmatmul.bf16.gmra.mxu0 %v1112
        %v2327 = vpop.f32.mrf.mxu0
        %v2328 = vadd.f32 %v2255, %v2327
        %v2329 = vpop.f32.mrf.mxu0
        %v2330 = vadd.f32 %v2257, %v2329
        %2331 = vmatmul.bf16.gmra.mxu0 %v1124
        %v2332 = vpop.f32.mrf.mxu0
        %v2333 = vadd.f32 %v2260, %v2332
        %v2334 = vpop.f32.mrf.mxu0
        %v2335 = vadd.f32 %v2262, %v2334
        %2336 = vmatmul.bf16.gmra.mxu0 %v1136
        %v2337 = vpop.f32.mrf.mxu0
        %v2338 = vadd.f32 %v2265, %v2337
        %v2339 = vpop.f32.mrf.mxu0
        %v2340 = vadd.f32 %v2267, %v2339
        %2341 = vmatmul.bf16.gmra.mxu0 %v1148
        %v2342 = vpop.f32.mrf.mxu0
        %v2343 = vadd.f32 %v2270, %v2342
        %v2344 = vpop.f32.mrf.mxu0
        %v2345 = vadd.f32 %v2272, %v2344
        %2346 = vmatmul.bf16.gmra.mxu0 %v1160
        %v2347 = vpop.f32.mrf.mxu0
        %v2348 = vadd.f32 %v2275, %v2347
        %v2349 = vpop.f32.mrf.mxu0
        %v2350 = vadd.f32 %v2277, %v2349
        %2351 = vmatmul.bf16.gmra.mxu0 %v1172
        %v2352 = vpop.f32.mrf.mxu0
        %v2353 = vadd.f32 %v2280, %v2352
        %v2354 = vpop.f32.mrf.mxu0
        %v2355 = vadd.f32 %v2282, %v2354
        %2356 = vmatmul.bf16.gmra.mxu0 %v1184
        %v2357 = vpop.f32.mrf.mxu0
        %v2358 = vadd.f32 %v2285, %v2357
        %v2359 = vpop.f32.mrf.mxu0
        %2360 = vdwg.mxu0
        %2361 = vmatpush.bf16.msra.mxu0 %v1786
        %2362 = vmatpush.bf16.msra.mxu0 %v1785
        %2363 = vmatpush.bf16.msra.mxu0 %v1784
        %2364 = vmatpush.bf16.msra.mxu0 %v1783
        %2365 = vmatpush.bf16.msra.mxu0 %v1782
        %2366 = vmatpush.bf16.msra.mxu0 %v1781
        %2367 = vmatpush.bf16.msra.mxu0 %v1780
        %2368 = vmatpush.bf16.msra.mxu0 %v1779
        %2369 = vmatmul.bf16.gmra.mxu0 %v1041
        %v2370 = vpop.f32.mrf.mxu0
        %v2371 = vadd.f32 %v2298, %v2370
        %v2372 = vpop.f32.mrf.mxu0
        %v2373 = vadd.f32 %v2300, %v2372
        %2374 = vmatmul.bf16.gmra.mxu0 %v1053
        %v2375 = vpop.f32.mrf.mxu0
        %v2376 = vadd.f32 %v2303, %v2375
        %v2377 = vpop.f32.mrf.mxu0
        %v2378 = vadd.f32 %v2305, %v2377
        %2379 = vmatmul.bf16.gmra.mxu0 %v1065
        %v2380 = vpop.f32.mrf.mxu0
        %v2381 = vadd.f32 %v2308, %v2380
        %v2382 = vpop.f32.mrf.mxu0
        %v2383 = vadd.f32 %v2310, %v2382
        %2384 = vmatmul.bf16.gmra.mxu0 %v1077
        %v2385 = vpop.f32.mrf.mxu0
        %v2386 = vadd.f32 %v2313, %v2385
        %v2387 = vpop.f32.mrf.mxu0
        %v2388 = vadd.f32 %v2315, %v2387
        %2389 = vmatmul.bf16.gmra.mxu0 %v1089
        %v2390 = vpop.f32.mrf.mxu0
        %v2391 = vadd.f32 %v2318, %v2390
        %v2392 = vpop.f32.mrf.mxu0
        %v2393 = vadd.f32 %v2320, %v2392
        %2394 = vmatmul.bf16.gmra.mxu0 %v1101
        %v2395 = vpop.f32.mrf.mxu0
        %v2396 = vadd.f32 %v2323, %v2395
        %v2397 = vpop.f32.mrf.mxu0
        %v2398 = vadd.f32 %v2325, %v2397
        %2399 = vmatmul.bf16.gmra.mxu0 %v1113
        %v2400 = vpop.f32.mrf.mxu0
        %v2401 = vadd.f32 %v2328, %v2400
        %v2402 = vpop.f32.mrf.mxu0
        %v2403 = vadd.f32 %v2330, %v2402
        %2404 = vmatmul.bf16.gmra.mxu0 %v1125
        %v2405 = vpop.f32.mrf.mxu0
        %v2406 = vadd.f32 %v2333, %v2405
        %v2407 = vpop.f32.mrf.mxu0
        %v2408 = vadd.f32 %v2335, %v2407
        %2409 = vmatmul.bf16.gmra.mxu0 %v1137
        %v2410 = vpop.f32.mrf.mxu0
        %v2411 = vadd.f32 %v2338, %v2410
        %v2412 = vpop.f32.mrf.mxu0
        %v2413 = vadd.f32 %v2340, %v2412
        %2414 = vmatmul.bf16.gmra.mxu0 %v1149
        %v2415 = vpop.f32.mrf.mxu0
        %v2416 = vadd.f32 %v2343, %v2415
        %v2417 = vpop.f32.mrf.mxu0
        %v2418 = vadd.f32 %v2345, %v2417
        %2419 = vmatmul.bf16.gmra.mxu0 %v1161
        %v2420 = vpop.f32.mrf.mxu0
        %v2421 = vadd.f32 %v2348, %v2420
        %v2422 = vpop.f32.mrf.mxu0
        %v2423 = vadd.f32 %v2350, %v2422
        %2424 = vmatmul.bf16.gmra.mxu0 %v1173
        %v2425 = vpop.f32.mrf.mxu0
        %v2426 = vadd.f32 %v2353, %v2425
        %v2427 = vpop.f32.mrf.mxu0
        %v2428 = vadd.f32 %v2355, %v2427
        %2429 = vmatmul.bf16.gmra.mxu0 %v1185
        %v2430 = vpop.f32.mrf.mxu0
        %v2431 = vadd.f32 %v2358, %v2430
        %v2432 = vpop.f32.mrf.mxu0
        %2433 = vdwg.mxu0
        %2434 = vmatpush.bf16.msra.mxu0 %v1794
        %2435 = vmatpush.bf16.msra.mxu0 %v1793
        %2436 = vmatpush.bf16.msra.mxu0 %v1792
        %2437 = vmatpush.bf16.msra.mxu0 %v1791
        %2438 = vmatpush.bf16.msra.mxu0 %v1790
        %2439 = vmatpush.bf16.msra.mxu0 %v1789
        %2440 = vmatpush.bf16.msra.mxu0 %v1788
        %2441 = vmatpush.bf16.msra.mxu0 %v1787
        %2442 = vmatmul.bf16.gmra.mxu0 %v1042
        %v2443 = vpop.f32.mrf.mxu0
        %v2444 = vadd.f32 %v2371, %v2443
        %v2445 = vpop.f32.mrf.mxu0
        %v2446 = vadd.f32 %v2373, %v2445
        %2447 = vmatmul.bf16.gmra.mxu0 %v1054
        %v2448 = vpop.f32.mrf.mxu0
        %v2449 = vadd.f32 %v2376, %v2448
        %v2450 = vpop.f32.mrf.mxu0
        %v2451 = vadd.f32 %v2378, %v2450
        %2452 = vmatmul.bf16.gmra.mxu0 %v1066
        %v2453 = vpop.f32.mrf.mxu0
        %v2454 = vadd.f32 %v2381, %v2453
        %v2455 = vpop.f32.mrf.mxu0
        %v2456 = vadd.f32 %v2383, %v2455
        %2457 = vmatmul.bf16.gmra.mxu0 %v1078
        %v2458 = vpop.f32.mrf.mxu0
        %v2459 = vadd.f32 %v2386, %v2458
        %v2460 = vpop.f32.mrf.mxu0
        %v2461 = vadd.f32 %v2388, %v2460
        %2462 = vmatmul.bf16.gmra.mxu0 %v1090
        %v2463 = vpop.f32.mrf.mxu0
        %v2464 = vadd.f32 %v2391, %v2463
        %v2465 = vpop.f32.mrf.mxu0
        %v2466 = vadd.f32 %v2393, %v2465
        %2467 = vmatmul.bf16.gmra.mxu0 %v1102
        %v2468 = vpop.f32.mrf.mxu0
        %v2469 = vadd.f32 %v2396, %v2468
        %v2470 = vpop.f32.mrf.mxu0
        %v2471 = vadd.f32 %v2398, %v2470
        %2472 = vmatmul.bf16.gmra.mxu0 %v1114
        %v2473 = vpop.f32.mrf.mxu0
        %v2474 = vadd.f32 %v2401, %v2473
        %v2475 = vpop.f32.mrf.mxu0
        %v2476 = vadd.f32 %v2403, %v2475
        %2477 = vmatmul.bf16.gmra.mxu0 %v1126
        %v2478 = vpop.f32.mrf.mxu0
        %v2479 = vadd.f32 %v2406, %v2478
        %v2480 = vpop.f32.mrf.mxu0
        %v2481 = vadd.f32 %v2408, %v2480
        %2482 = vmatmul.bf16.gmra.mxu0 %v1138
        %v2483 = vpop.f32.mrf.mxu0
        %v2484 = vadd.f32 %v2411, %v2483
        %v2485 = vpop.f32.mrf.mxu0
        %v2486 = vadd.f32 %v2413, %v2485
        %2487 = vmatmul.bf16.gmra.mxu0 %v1150
        %v2488 = vpop.f32.mrf.mxu0
        %v2489 = vadd.f32 %v2416, %v2488
        %v2490 = vpop.f32.mrf.mxu0
        %v2491 = vadd.f32 %v2418, %v2490
        %2492 = vmatmul.bf16.gmra.mxu0 %v1162
        %v2493 = vpop.f32.mrf.mxu0
        %v2494 = vadd.f32 %v2421, %v2493
        %v2495 = vpop.f32.mrf.mxu0
        %v2496 = vadd.f32 %v2423, %v2495
        %2497 = vmatmul.bf16.gmra.mxu0 %v1174
        %v2498 = vpop.f32.mrf.mxu0
        %v2499 = vadd.f32 %v2426, %v2498
        %v2500 = vpop.f32.mrf.mxu0
        %v2501 = vadd.f32 %v2428, %v2500
        %2502 = vmatmul.bf16.gmra.mxu0 %v1186
        %v2503 = vpop.f32.mrf.mxu0
        %v2504 = vadd.f32 %v2431, %v2503
        %v2505 = vpop.f32.mrf.mxu0
        %2506 = vdwg.mxu0
        %2507 = vmatpush.bf16.msra.mxu0 %v1802
        %2508 = vmatpush.bf16.msra.mxu0 %v1801
        %2509 = vmatpush.bf16.msra.mxu0 %v1800
        %2510 = vmatpush.bf16.msra.mxu0 %v1799
        %2511 = vmatpush.bf16.msra.mxu0 %v1798
        %2512 = vmatpush.bf16.msra.mxu0 %v1797
        %2513 = vmatpush.bf16.msra.mxu0 %v1796
        %2514 = vmatpush.bf16.msra.mxu0 %v1795
        %2515 = vmatmul.bf16.gmra.mxu0 %v1043
        %v2516 = vpop.f32.mrf.mxu0
        %v2517 = vadd.f32 %v2444, %v2516
        %v2518 = vpop.f32.mrf.mxu0
        %v2519 = vadd.f32 %v2446, %v2518
        %2520 = vmatmul.bf16.gmra.mxu0 %v1055
        %v2521 = vpop.f32.mrf.mxu0
        %v2522 = vadd.f32 %v2449, %v2521
        %v2523 = vpop.f32.mrf.mxu0
        %v2524 = vadd.f32 %v2451, %v2523
        %2525 = vmatmul.bf16.gmra.mxu0 %v1067
        %v2526 = vpop.f32.mrf.mxu0
        %v2527 = vadd.f32 %v2454, %v2526
        %v2528 = vpop.f32.mrf.mxu0
        %v2529 = vadd.f32 %v2456, %v2528
        %2530 = vmatmul.bf16.gmra.mxu0 %v1079
        %v2531 = vpop.f32.mrf.mxu0
        %v2532 = vadd.f32 %v2459, %v2531
        %v2533 = vpop.f32.mrf.mxu0
        %v2534 = vadd.f32 %v2461, %v2533
        %2535 = vmatmul.bf16.gmra.mxu0 %v1091
        %v2536 = vpop.f32.mrf.mxu0
        %v2537 = vadd.f32 %v2464, %v2536
        %v2538 = vpop.f32.mrf.mxu0
        %v2539 = vadd.f32 %v2466, %v2538
        %2540 = vmatmul.bf16.gmra.mxu0 %v1103
        %v2541 = vpop.f32.mrf.mxu0
        %v2542 = vadd.f32 %v2469, %v2541
        %v2543 = vpop.f32.mrf.mxu0
        %v2544 = vadd.f32 %v2471, %v2543
        %2545 = vmatmul.bf16.gmra.mxu0 %v1115
        %v2546 = vpop.f32.mrf.mxu0
        %v2547 = vadd.f32 %v2474, %v2546
        %v2548 = vpop.f32.mrf.mxu0
        %v2549 = vadd.f32 %v2476, %v2548
        %2550 = vmatmul.bf16.gmra.mxu0 %v1127
        %v2551 = vpop.f32.mrf.mxu0
        %v2552 = vadd.f32 %v2479, %v2551
        %v2553 = vpop.f32.mrf.mxu0
        %v2554 = vadd.f32 %v2481, %v2553
        %2555 = vmatmul.bf16.gmra.mxu0 %v1139
        %v2556 = vpop.f32.mrf.mxu0
        %v2557 = vadd.f32 %v2484, %v2556
        %v2558 = vpop.f32.mrf.mxu0
        %v2559 = vadd.f32 %v2486, %v2558
        %2560 = vmatmul.bf16.gmra.mxu0 %v1151
        %v2561 = vpop.f32.mrf.mxu0
        %v2562 = vadd.f32 %v2489, %v2561
        %v2563 = vpop.f32.mrf.mxu0
        %v2564 = vadd.f32 %v2491, %v2563
        %2565 = vmatmul.bf16.gmra.mxu0 %v1163
        %v2566 = vpop.f32.mrf.mxu0
        %v2567 = vadd.f32 %v2494, %v2566
        %v2568 = vpop.f32.mrf.mxu0
        %v2569 = vadd.f32 %v2496, %v2568
        %2570 = vmatmul.bf16.gmra.mxu0 %v1175
        %v2571 = vpop.f32.mrf.mxu0
        %v2572 = vadd.f32 %v2499, %v2571
        %v2573 = vpop.f32.mrf.mxu0
        %v2574 = vadd.f32 %v2501, %v2573
        %2575 = vmatmul.bf16.gmra.mxu0 %v1187
        %v2576 = vpop.f32.mrf.mxu0
        %v2577 = vadd.f32 %v2504, %v2576
        %v2578 = vpop.f32.mrf.mxu0
        %2579 = vdwg.mxu0
        %2580 = vmatpush.bf16.msra.mxu0 %v1810
        %2581 = vmatpush.bf16.msra.mxu0 %v1809
        %2582 = vmatpush.bf16.msra.mxu0 %v1808
        %2583 = vmatpush.bf16.msra.mxu0 %v1807
        %2584 = vmatpush.bf16.msra.mxu0 %v1806
        %2585 = vmatpush.bf16.msra.mxu0 %v1805
        %2586 = vmatpush.bf16.msra.mxu0 %v1804
        %2587 = vmatpush.bf16.msra.mxu0 %v1803
        %2588 = vmatmul.bf16.gmra.mxu0 %v1044
        %v2589 = vpop.f32.mrf.mxu0
        %v2590 = vadd.f32 %v2517, %v2589
        %v2591 = vpop.f32.mrf.mxu0
        %v2592 = vadd.f32 %v2519, %v2591
        %2593 = vmatmul.bf16.gmra.mxu0 %v1056
        %v2594 = vpop.f32.mrf.mxu0
        %v2595 = vadd.f32 %v2522, %v2594
        %v2596 = vpop.f32.mrf.mxu0
        %v2597 = vadd.f32 %v2524, %v2596
        %2598 = vmatmul.bf16.gmra.mxu0 %v1068
        %v2599 = vpop.f32.mrf.mxu0
        %v2600 = vadd.f32 %v2527, %v2599
        %v2601 = vpop.f32.mrf.mxu0
        %v2602 = vadd.f32 %v2529, %v2601
        %2603 = vmatmul.bf16.gmra.mxu0 %v1080
        %v2604 = vpop.f32.mrf.mxu0
        %v2605 = vadd.f32 %v2532, %v2604
        %v2606 = vpop.f32.mrf.mxu0
        %v2607 = vadd.f32 %v2534, %v2606
        %2608 = vmatmul.bf16.gmra.mxu0 %v1092
        %v2609 = vpop.f32.mrf.mxu0
        %v2610 = vadd.f32 %v2537, %v2609
        %v2611 = vpop.f32.mrf.mxu0
        %v2612 = vadd.f32 %v2539, %v2611
        %2613 = vmatmul.bf16.gmra.mxu0 %v1104
        %v2614 = vpop.f32.mrf.mxu0
        %v2615 = vadd.f32 %v2542, %v2614
        %v2616 = vpop.f32.mrf.mxu0
        %v2617 = vadd.f32 %v2544, %v2616
        %2618 = vmatmul.bf16.gmra.mxu0 %v1116
        %v2619 = vpop.f32.mrf.mxu0
        %v2620 = vadd.f32 %v2547, %v2619
        %v2621 = vpop.f32.mrf.mxu0
        %v2622 = vadd.f32 %v2549, %v2621
        %2623 = vmatmul.bf16.gmra.mxu0 %v1128
        %v2624 = vpop.f32.mrf.mxu0
        %v2625 = vadd.f32 %v2552, %v2624
        %v2626 = vpop.f32.mrf.mxu0
        %v2627 = vadd.f32 %v2554, %v2626
        %2628 = vmatmul.bf16.gmra.mxu0 %v1140
        %v2629 = vpop.f32.mrf.mxu0
        %v2630 = vadd.f32 %v2557, %v2629
        %v2631 = vpop.f32.mrf.mxu0
        %v2632 = vadd.f32 %v2559, %v2631
        %2633 = vmatmul.bf16.gmra.mxu0 %v1152
        %v2634 = vpop.f32.mrf.mxu0
        %v2635 = vadd.f32 %v2562, %v2634
        %v2636 = vpop.f32.mrf.mxu0
        %v2637 = vadd.f32 %v2564, %v2636
        %2638 = vmatmul.bf16.gmra.mxu0 %v1164
        %v2639 = vpop.f32.mrf.mxu0
        %v2640 = vadd.f32 %v2567, %v2639
        %v2641 = vpop.f32.mrf.mxu0
        %v2642 = vadd.f32 %v2569, %v2641
        %2643 = vmatmul.bf16.gmra.mxu0 %v1176
        %v2644 = vpop.f32.mrf.mxu0
        %v2645 = vadd.f32 %v2572, %v2644
        %v2646 = vpop.f32.mrf.mxu0
        %v2647 = vadd.f32 %v2574, %v2646
        %2648 = vmatmul.bf16.gmra.mxu0 %v1188
        %v2649 = vpop.f32.mrf.mxu0
        %v2650 = vadd.f32 %v2577, %v2649
        %v2651 = vpop.f32.mrf.mxu0
        %2652 = vdwg.mxu0
        %2653 = vmatpush.bf16.msra.mxu0 %v1818
        %2654 = vmatpush.bf16.msra.mxu0 %v1817
        %2655 = vmatpush.bf16.msra.mxu0 %v1816
        %2656 = vmatpush.bf16.msra.mxu0 %v1815
        %2657 = vmatpush.bf16.msra.mxu0 %v1814
        %2658 = vmatpush.bf16.msra.mxu0 %v1813
        %2659 = vmatpush.bf16.msra.mxu0 %v1812
        %2660 = vmatpush.bf16.msra.mxu0 %v1811
        %2661 = vmatmul.bf16.gmra.mxu0 %v1045
        %v2662 = vpop.f32.mrf.mxu0
        %v2663 = vadd.f32 %v2590, %v2662
        %v2664 = vpop.f32.mrf.mxu0
        %v2665 = vadd.f32 %v2592, %v2664
        %2666 = vmatmul.bf16.gmra.mxu0 %v1057
        %v2667 = vpop.f32.mrf.mxu0
        %v2668 = vadd.f32 %v2595, %v2667
        %v2669 = vpop.f32.mrf.mxu0
        %v2670 = vadd.f32 %v2597, %v2669
        %2671 = vmatmul.bf16.gmra.mxu0 %v1069
        %v2672 = vpop.f32.mrf.mxu0
        %v2673 = vadd.f32 %v2600, %v2672
        %v2674 = vpop.f32.mrf.mxu0
        %v2675 = vadd.f32 %v2602, %v2674
        %2676 = vmatmul.bf16.gmra.mxu0 %v1081
        %v2677 = vpop.f32.mrf.mxu0
        %v2678 = vadd.f32 %v2605, %v2677
        %v2679 = vpop.f32.mrf.mxu0
        %v2680 = vadd.f32 %v2607, %v2679
        %2681 = vmatmul.bf16.gmra.mxu0 %v1093
        %v2682 = vpop.f32.mrf.mxu0
        %v2683 = vadd.f32 %v2610, %v2682
        %v2684 = vpop.f32.mrf.mxu0
        %v2685 = vadd.f32 %v2612, %v2684
        %2686 = vmatmul.bf16.gmra.mxu0 %v1105
        %v2687 = vpop.f32.mrf.mxu0
        %v2688 = vadd.f32 %v2615, %v2687
        %v2689 = vpop.f32.mrf.mxu0
        %v2690 = vadd.f32 %v2617, %v2689
        %2691 = vmatmul.bf16.gmra.mxu0 %v1117
        %v2692 = vpop.f32.mrf.mxu0
        %v2693 = vadd.f32 %v2620, %v2692
        %v2694 = vpop.f32.mrf.mxu0
        %v2695 = vadd.f32 %v2622, %v2694
        %2696 = vmatmul.bf16.gmra.mxu0 %v1129
        %v2697 = vpop.f32.mrf.mxu0
        %v2698 = vadd.f32 %v2625, %v2697
        %v2699 = vpop.f32.mrf.mxu0
        %v2700 = vadd.f32 %v2627, %v2699
        %2701 = vmatmul.bf16.gmra.mxu0 %v1141
        %v2702 = vpop.f32.mrf.mxu0
        %v2703 = vadd.f32 %v2630, %v2702
        %v2704 = vpop.f32.mrf.mxu0
        %v2705 = vadd.f32 %v2632, %v2704
        %2706 = vmatmul.bf16.gmra.mxu0 %v1153
        %v2707 = vpop.f32.mrf.mxu0
        %v2708 = vadd.f32 %v2635, %v2707
        %v2709 = vpop.f32.mrf.mxu0
        %v2710 = vadd.f32 %v2637, %v2709
        %2711 = vmatmul.bf16.gmra.mxu0 %v1165
        %v2712 = vpop.f32.mrf.mxu0
        %v2713 = vadd.f32 %v2640, %v2712
        %v2714 = vpop.f32.mrf.mxu0
        %v2715 = vadd.f32 %v2642, %v2714
        %2716 = vmatmul.bf16.gmra.mxu0 %v1177
        %v2717 = vpop.f32.mrf.mxu0
        %v2718 = vadd.f32 %v2645, %v2717
        %v2719 = vpop.f32.mrf.mxu0
        %v2720 = vadd.f32 %v2647, %v2719
        %2721 = vmatmul.bf16.gmra.mxu0 %v1189
        %v2722 = vpop.f32.mrf.mxu0
        %v2723 = vadd.f32 %v2650, %v2722
        %v2724 = vpop.f32.mrf.mxu0
        %2725 = vdwg.mxu0
        %2726 = vmatpush.bf16.msra.mxu0 %v1826
        %2727 = vmatpush.bf16.msra.mxu0 %v1825
        %2728 = vmatpush.bf16.msra.mxu0 %v1824
        %2729 = vmatpush.bf16.msra.mxu0 %v1823
        %2730 = vmatpush.bf16.msra.mxu0 %v1822
        %2731 = vmatpush.bf16.msra.mxu0 %v1821
        %2732 = vmatpush.bf16.msra.mxu0 %v1820
        %2733 = vmatpush.bf16.msra.mxu0 %v1819
        %2734 = vmatmul.bf16.gmra.mxu0 %v1046
        %v2735 = vpop.f32.mrf.mxu0
        %v2736 = vadd.f32 %v2663, %v2735
        %v2737 = vpop.f32.mrf.mxu0
        %v2738 = vadd.f32 %v2665, %v2737
        %2739 = vmatmul.bf16.gmra.mxu0 %v1058
        %v2740 = vpop.f32.mrf.mxu0
        %v2741 = vadd.f32 %v2668, %v2740
        %v2742 = vpop.f32.mrf.mxu0
        %v2743 = vadd.f32 %v2670, %v2742
        %2744 = vmatmul.bf16.gmra.mxu0 %v1070
        %v2745 = vpop.f32.mrf.mxu0
        %v2746 = vadd.f32 %v2673, %v2745
        %v2747 = vpop.f32.mrf.mxu0
        %v2748 = vadd.f32 %v2675, %v2747
        %2749 = vmatmul.bf16.gmra.mxu0 %v1082
        %v2750 = vpop.f32.mrf.mxu0
        %v2751 = vadd.f32 %v2678, %v2750
        %v2752 = vpop.f32.mrf.mxu0
        %v2753 = vadd.f32 %v2680, %v2752
        %2754 = vmatmul.bf16.gmra.mxu0 %v1094
        %v2755 = vpop.f32.mrf.mxu0
        %v2756 = vadd.f32 %v2683, %v2755
        %v2757 = vpop.f32.mrf.mxu0
        %v2758 = vadd.f32 %v2685, %v2757
        %2759 = vmatmul.bf16.gmra.mxu0 %v1106
        %v2760 = vpop.f32.mrf.mxu0
        %v2761 = vadd.f32 %v2688, %v2760
        %v2762 = vpop.f32.mrf.mxu0
        %v2763 = vadd.f32 %v2690, %v2762
        %2764 = vmatmul.bf16.gmra.mxu0 %v1118
        %v2765 = vpop.f32.mrf.mxu0
        %v2766 = vadd.f32 %v2693, %v2765
        %v2767 = vpop.f32.mrf.mxu0
        %v2768 = vadd.f32 %v2695, %v2767
        %2769 = vmatmul.bf16.gmra.mxu0 %v1130
        %v2770 = vpop.f32.mrf.mxu0
        %v2771 = vadd.f32 %v2698, %v2770
        %v2772 = vpop.f32.mrf.mxu0
        %v2773 = vadd.f32 %v2700, %v2772
        %2774 = vmatmul.bf16.gmra.mxu0 %v1142
        %v2775 = vpop.f32.mrf.mxu0
        %v2776 = vadd.f32 %v2703, %v2775
        %v2777 = vpop.f32.mrf.mxu0
        %v2778 = vadd.f32 %v2705, %v2777
        %2779 = vmatmul.bf16.gmra.mxu0 %v1154
        %v2780 = vpop.f32.mrf.mxu0
        %v2781 = vadd.f32 %v2708, %v2780
        %v2782 = vpop.f32.mrf.mxu0
        %v2783 = vadd.f32 %v2710, %v2782
        %2784 = vmatmul.bf16.gmra.mxu0 %v1166
        %v2785 = vpop.f32.mrf.mxu0
        %v2786 = vadd.f32 %v2713, %v2785
        %v2787 = vpop.f32.mrf.mxu0
        %v2788 = vadd.f32 %v2715, %v2787
        %2789 = vmatmul.bf16.gmra.mxu0 %v1178
        %v2790 = vpop.f32.mrf.mxu0
        %v2791 = vadd.f32 %v2718, %v2790
        %v2792 = vpop.f32.mrf.mxu0
        %v2793 = vadd.f32 %v2720, %v2792
        %2794 = vmatmul.bf16.gmra.mxu0 %v1190
        %v2795 = vpop.f32.mrf.mxu0
        %v2796 = vadd.f32 %v2723, %v2795
        %v2797 = vpop.f32.mrf.mxu0
        %2798 = vdwg.mxu0
        %2799 = vst [vmem:[%s238] sm:$0xff] %v2736
        %2800 = vst [vmem:[%s238 + $0x8] sm:$0xff] %v2738
        %2801 = vst [vmem:[%s238 + $0x10] sm:$0xff] %v2741
        %2802 = vst [vmem:[%s238 + $0x18] sm:$0xff] %v2743
        %2803 = vst [vmem:[%s238 + $0x20] sm:$0xff] %v2746
        %2804 = vst [vmem:[%s238 + $0x28] sm:$0xff] %v2748
        %2805 = vst [vmem:[%s238 + $0x30] sm:$0xff] %v2751
        %2806 = vst [vmem:[%s238 + $0x38] sm:$0xff] %v2753
        %2807 = vst [vmem:[%s238 + $0x40] sm:$0xff] %v2756
        %2808 = vst [vmem:[%s238 + $0x48] sm:$0xff] %v2758
        %2809 = vst [vmem:[%s238 + $0x50] sm:$0xff] %v2761
        %2810 = vst [vmem:[%s238 + $0x58] sm:$0xff] %v2763
        %2811 = vst [vmem:[%s238 + $0x60] sm:$0xff] %v2766
        %2812 = vst [vmem:[%s238 + $0x68] sm:$0xff] %v2768
        %2813 = vst [vmem:[%s238 + $0x70] sm:$0xff] %v2771
        %2814 = vst [vmem:[%s238 + $0x78] sm:$0xff] %v2773
        %2815 = vst [vmem:[%s238 + $0x80] sm:$0xff] %v2776
        %2816 = vst [vmem:[%s238 + $0x88] sm:$0xff] %v2778
        %2817 = vst [vmem:[%s238 + $0x90] sm:$0xff] %v2781
        %2818 = vst [vmem:[%s238 + $0x98] sm:$0xff] %v2783
        %2819 = vst [vmem:[%s238 + $0xa0] sm:$0xff] %v2786
        %2820 = vst [vmem:[%s238 + $0xa8] sm:$0xff] %v2788
        %2821 = vst [vmem:[%s238 + $0xb0] sm:$0xff] %v2791
        %2822 = vst [vmem:[%s238 + $0xb8] sm:$0xff] %v2793
        %2823 = vst [vmem:[%s238 + $0xc0] sm:$0xf] %v2796
        %s2824 = sand.u32 %s102, 1
        %s2825 = scalar_lea.sflag [#allocation4], %s2824
        %s2826 = sand.u32 %s102, 1
        %s2827 = smul.addr %s2826, 200
        %s2828 = scalar_lea.vmem [#allocation8], %s2827
        // Predicated region
        $region45: #{tpu_custom_call.1} parent=31 // pred_check
          %p2829 = pneg %p112
        $region46: #{tpu_custom_call.1} parent=31 // pred_check_branch
          %2831 = sbr.rel (%p2829) target = $region48
        $region47: #{tpu_custom_call.1} parent=31 // pred_region
          %2833 = vsyncadd %s2825, 0
          %s2834 = smul.addr %s21, 8
          %s2835 = scalar_lea.hbm %s3, %s2834
          %s2836 = sshll.u32 %s2828, 4
          %s2837 = int_to_ptr.vmem [resolvable:$true] %s2836
          %s2838 = sshll.u32 %s2835, 4
          %s2839 = int_to_ptr.hbm [resolvable:$true] %s2838
          %2844 = dma.vmem_to_hbm [thread:$0]  %s2837, 3200, %s2839, %s2825, 128, 384, 8
        $region48: #{tpu_custom_call.1} parent=31 // pred_fallthru
          _
      $region32: #{tpu_custom_call.1} parent=5 // pred_fallthru
        _
      %p2845 = scmp.le.s32.totalorder 2, %s16
      // Predicated region
      $region49: #{tpu_custom_call.1} parent=5 // pred_check
        %p2846 = pneg %p2845
      $region50: #{tpu_custom_call.1} parent=5 // pred_check_branch
        %2848 = sbr.rel (%p2846) target = $region52
      $region51: #{tpu_custom_call.1} parent=5 // pred_region
        %s2849 = ssub.s32 %s16, 2
        // Predicated region
        $region53: #{tpu_custom_call.1} parent=51 // pred_check
          %p2850 = pneg %p118
        $region54: #{tpu_custom_call.1} parent=51 // pred_check_branch
          %2852 = sbr.rel (%p2850) target = $region56
        $region55: #{tpu_custom_call.1} parent=51 // pred_region
          %s2853 = sand.u32 %s103, 1
          %s2854 = scalar_lea.sflag [#allocation4], %s2853
          %s2855 = sand.u32 %s103, 1
          %s2856 = smul.addr %s2855, 200
          %s2857 = scalar_lea.vmem [#allocation8], %s2856
          %2859 = dma.done %s2854, 3200
        $region56: #{tpu_custom_call.1} parent=51 // pred_fallthru
          _
      $region52: #{tpu_custom_call.1} parent=5 // pred_fallthru
        _
    $region6: #{tpu_custom_call.1} parent=1 // loop_footer
      %s20 = sadd.s32 1, %s16
    $region7: #{tpu_custom_call.1} parent=1 // loop_footer_branch
      %15 = sbr.rel target = $region3
    $region8: #{tpu_custom_call.1} parent=1 // loop_exit
      _
    %2860 = vsyncpa [#allocation3], 1
    %s2861 = scalar_lea.sflag [#allocation3], 1
    %2862 = vsyncpa %s2861, 1
    %2863 = vsyncpa [#allocation6], 1
    %s2864 = scalar_lea.sflag [#allocation6], 1
    %2865 = vsyncpa %s2864, 1
    %2866 = vsyncpa [#allocation4], 1
    %s2867 = scalar_lea.sflag [#allocation4], 1
    %2868 = vsyncpa %s2867, 1

</llo_original>
